<compile_context>
chip_gen: v7x
topology: tpu7x:2x2x1
jax: 0.10.0
libtpu: 0.0.40
codegen_flags: <defaults>
</compile_context>

<pallas_src>
import functools

import numpy as np
import jax
import jax.numpy as jnp
from jax.experimental import pallas as pl
from jax.experimental.pallas import tpu as pltpu

EPS = 1e-5


def _resblock_kernel(x_ref, w_ref, out_ref, *, Bt, H, W, C):
    """Fused ResBlock for Bt samples in lane-fused (Bt*H, W*C) layout."""
    WC = W * C
    M = Bt * H
    n_inv = 1.0 / float(H * W)

    x = x_ref[...]                                        # (M, WC) f32

    # Per-sample row index, used to patch the reflected height border.
    row = jax.lax.broadcasted_iota(jnp.int32, (M, WC), 0) % H
    is_top = row == 0
    is_bot = row == H - 1

    def conv_in_relu(v, wsel):
        # Height reflect-pad without an (H+2)-row buffer: +/-1-row shifts of
        # the resident tile; rows that wrap across sample boundaries are
        # exactly the rows the jnp.where boundary fix overwrites.
        up = jnp.roll(v, 1, axis=0)          # row m -> v[m-1]
        dn = jnp.roll(v, -1, axis=0)         # row m -> v[m+1]
        op0 = jnp.where(is_top, dn, up)      # padded row -1 == row 1
        op2 = jnp.where(is_bot, up, dn)      # padded row H  == row H-2

        # 3x3 conv == 3 aligned (M,WC)x(WC,WC) bf16 MXU matmuls against the
        # block-banded weights (width reflect-pad folded in), f32 accumulate.
        acc = jnp.dot(op0.astype(jnp.bfloat16), w_ref[wsel, 0],
                      preferred_element_type=jnp.float32)
        acc = acc + jnp.dot(v.astype(jnp.bfloat16), w_ref[wsel, 1],
                            preferred_element_type=jnp.float32)
        acc = acc + jnp.dot(op2.astype(jnp.bfloat16), w_ref[wsel, 2],
                            preferred_element_type=jnp.float32)

        # InstanceNorm2d (affine=False, biased var, eps=1e-5) + ReLU.
        # Per-sample, per-channel sums: sublane reduce, then a log2(W)
        # hypercube lane roll-reduce (exact f32, direction-independent);
        # one-pass E[x^2]-mean^2 in full f32 (switch to two-pass if tolerance
        # must tighten).
        pieces = []
        for b in range(Bt):                  # static, sublane-aligned slices
            a = acc[b * H:(b + 1) * H]                    # (H, WC)
            s1 = jnp.sum(a, axis=0, keepdims=True)        # (1, WC)
            s2 = jnp.sum(a * a, axis=0, keepdims=True)
            shift = C
            while shift < WC:                             # log2(W) steps
                s1 = s1 + pltpu.roll(s1, shift, axis=1)
                s2 = s2 + pltpu.roll(s2, shift, axis=1)
                shift *= 2
            mean = s1 * n_inv
            var = jnp.maximum(s2 * n_inv - mean * mean, 0.0)
            y = (a - mean) * jax.lax.rsqrt(var + EPS)
            pieces.append(jnp.maximum(y, 0.0))            # ReLU
        return pieces[0] if Bt == 1 else jnp.concatenate(pieces, axis=0)

    h = conv_in_relu(x, 0)                  # intermediate h never leaves VMEM
    y = conv_in_relu(h, 1)
    out_ref[...] = (y + x).astype(out_ref.dtype)          # residual, lane-dense


def _reflect_shift(W, kw):
    """(W, W) matrix S with S[src, dst] = 1 where output column dst's conv
    tap kw reads source column src under 1-px reflection padding."""
    s = np.zeros((W, W), np.float32)
    for dst in range(W):
        src = dst + kw - 1
        if src < 0:
            src = -src                 # reflect col -1 -> 1
        elif src >= W:
            src = 2 * W - 2 - src      # reflect col  W -> W-2
        s[src, dst] = 1.0
    return s


def _expand_weights(w1_hwio, w2_hwio, W):
    """Two (3,3,Cin,Cout) HWIO conv weights -> (2, 3, W*Cin, W*Cout) bf16
    block-banded matrices with the 1-px width reflect-pad folded in, so the
    3x3 conv over the lane-fused (H, W*C) layout is 3 K=W*C MXU matmuls.
    O(9*W*C^2) bytes: small-C lane-packing regime; precompute once per model."""
    def expand(w):
        planes = []
        for kh in range(3):
            b = jnp.zeros((W * w.shape[2], W * w.shape[3]), jnp.float32)
            for kw in range(3):
                b = b + jnp.kron(jnp.asarray(_reflect_shift(W, kw)),
                                 w[kh, kw].astype(jnp.float32))
            planes.append(b)
        return jnp.stack(planes)
    return jnp.stack([expand(w1_hwio), expand(w2_hwio)]).astype(jnp.bfloat16)


def _pick_bt(B, H):
    """Samples per grid step: fill MXU rows (target M = Bt*H ~ 256) with a
    divisor of B.  TODO(synk): for large B also keep >= 8 steps per v7x core."""
    for cand in range(min(B, max(1, 256 // H)), 0, -1):
        if B % cand == 0:
            return cand
    return 1


def res_block_nhwc(x_nhwc, w1_hwio, w2_hwio, *, bt=None):
    """ResBlock forward, NHWC fast path (no layout transposes).
    x_nhwc: (B, H, W, C); w1/w2: (3, 3, C, C) HWIO."""
    B, H, W, C = x_nhwc.shape
    assert H >= 2 and W >= 2
    # TODO(synk): the lane roll-reduce needs power-of-2 W; other widths would
    # need a fallback (e.g. HIGHEST-precision matmul reduction).
    assert (W & (W - 1)) == 0, "W must be a power of two"
    WC = W * C
    if bt is None:
        bt = _pick_bt(B, H)
    assert B % bt == 0

    wb = _expand_weights(w1_hwio, w2_hwio, W)        # (2, 3, WC, WC) bf16
    x2d = x_nhwc.reshape(B * H, WC)                  # free reshape, lane-fused

    kernel = functools.partial(_resblock_kernel, Bt=bt, H=H, W=W, C=C)

    # VMEM budget from actual buffers: double-buffered x/out blocks and the
    # grid-invariant weight operand, plus an allowance for the f32
    # intermediates.  Capped below v7x's 64 MiB physical VMEM; on v5e/v6e
    # (128 MiB) this could be raised towards ~100 MiB before spatial tiling.
    blk_bytes = bt * H * WC * 4
    w_bytes = 2 * 3 * WC * WC * 2
    vmem_bytes = 4 * blk_bytes + 2 * w_bytes + 16 * blk_bytes + (4 << 20)
    vmem_bytes = int(min(max(vmem_bytes, 8 << 20), 56 << 20))

    out = pl.pallas_call(
        kernel,
        out_shape=jax.ShapeDtypeStruct((B * H, WC), x_nhwc.dtype),
        grid_spec=pltpu.PrefetchScalarGridSpec(
            num_scalar_prefetch=0,
            grid=(B // bt,),
            in_specs=[
                pl.BlockSpec((bt * H, WC), lambda b: (b, 0)),
                pl.BlockSpec((2, 3, WC, WC), lambda b: (0, 0, 0, 0)),
            ],
            out_specs=pl.BlockSpec((bt * H, WC), lambda b: (b, 0)),
        ),
        compiler_params=pltpu.CompilerParams(
            dimension_semantics=("parallel",),
            vmem_limit_bytes=vmem_bytes,
        ),
    )(x2d, wb)
    return out.reshape(B, H, W, C)


def res_block(x_nchw, w1_hwio, w2_hwio):
    """PyTorch-parity NCHW wrapper.  Prefer res_block_nhwc end-to-end in a
    model: each of these transposes is a full HBM round trip."""
    x = jnp.transpose(x_nchw, (0, 2, 3, 1))
    y = res_block_nhwc(x, w1_hwio, w2_hwio)
    return jnp.transpose(y, (0, 3, 1, 2))


def _ref_res_block(x_nchw, w1_hwio, w2_hwio):
    """Pure-JAX f32 reference matching the PyTorch module."""
    def conv_block(v, w):
        vp = jnp.pad(v, ((0, 0), (1, 1), (1, 1), (0, 0)), mode="reflect")
        y = jax.lax.conv_general_dilated(
            vp, w, (1, 1), "VALID",
            dimension_numbers=("NHWC", "HWIO", "NHWC"))
        m = y.mean(axis=(1, 2), keepdims=True)
        var = ((y - m) ** 2).mean(axis=(1, 2), keepdims=True)
        return jnp.maximum((y - m) / jnp.sqrt(var + EPS), 0.0)

    x = jnp.transpose(x_nchw, (0, 2, 3, 1))
    h = conv_block(x, w1_hwio)
    o = conv_block(h, w2_hwio) + x
    return jnp.transpose(o, (0, 3, 1, 2))


if __name__ == "__main__":
    B, C, H, W = 2, 8, 16, 16        # W*C == 128 -> fully lane-dense blocks
    key = jax.random.PRNGKey(0)
    kx, k1, k2 = jax.random.split(key, 3)

    x = jax.random.normal(kx, (B, C, H, W), dtype=jnp.float32)
    scale = 1.0 / jnp.sqrt(9.0 * C)  # Conv2d(C, C, 3, bias=False)-like scale
    w1 = jax.random.normal(k1, (3, 3, C, C), dtype=jnp.float32) * scale
    w2 = jax.random.normal(k2, (3, 3, C, C), dtype=jnp.float32) * scale

    out = jax.block_until_ready(res_block(x, w1, w2))
    ref = _ref_res_block(x, w1, w2)

    assert out.shape == (B, C, H, W)
    err = float(jnp.max(jnp.abs(out - ref)))
    # bf16 MXU conv matmuls (f32 accumulation, exact-f32 norm stats) vs. f32 ref.
    assert jnp.allclose(out, ref, atol=3e-2, rtol=3e-2), err
    print("KERNEL_OK")
</pallas_src>

<mosaic_0001>
module attributes {stable_mosaic.version = 11 : i64} {
  func.func @_resblock_kernel(%arg0: i32, %arg1: memref<32x128xf32, #tpu.memory_space<vmem>>, %arg2: memref<2x3x128x128xbf16, #tpu.memory_space<vmem>>, %arg3: memref<32x128xf32, #tpu.memory_space<vmem>>) attributes {dimension_semantics = [#tpu.dimension_semantics<parallel>], iteration_bounds = array<i64: 1>, scalar_prefetch = 0 : i64, scratch_operands = 0 : i64, tpu.core_type = #tpu.core_type<tc>, window_params = [{transform_indices = @transform_0, window_bounds = array<i64: 32, 128>}, {pipeline_mode = #tpu.pipeline_mode<synchronous>, transform_indices = @transform_1, window_bounds = array<i64: 2, 3, 128, 128>}, {transform_indices = @transform_2, window_bounds = array<i64: 32, 128>}]} {
    %c0 = arith.constant 0 : index
    %c0_0 = arith.constant 0 : index
    %0 = vector.load %arg1[%c0, %c0_0] : memref<32x128xf32, #tpu.memory_space<vmem>>, vector<32x128xf32>
    %1 = tpu.iota {dimensions = array<i32: 0>} : vector<32x128xi32>
    %c16_i32 = arith.constant 16 : i32
    %c0_i32 = arith.constant 0 : i32
    %2 = arith.cmpi eq, %c16_i32, %c0_i32 : i32
    %c1_i32 = arith.constant 1 : i32
    %3 = arith.select %2, %c1_i32, %c16_i32 : i32
    %4 = vector.broadcast %3 : i32 to vector<32x128xi32>
    %5 = arith.remsi %1, %4 : vector<32x128xi32>
    %c0_i32_1 = arith.constant 0 : i32
    %6 = vector.broadcast %c0_i32_1 : i32 to vector<32x128xi32>
    %7 = arith.cmpi ne, %5, %6 : vector<32x128xi32>
    %c0_i32_2 = arith.constant 0 : i32
    %8 = vector.broadcast %c0_i32_2 : i32 to vector<32x128xi32>
    %9 = arith.cmpi slt, %5, %8 : vector<32x128xi32>
    %c0_i32_3 = arith.constant 0 : i32
    %10 = arith.cmpi slt, %3, %c0_i32_3 : i32
    %11 = vector.broadcast %10 : i1 to vector<32x128xi1>
    %12 = vector.broadcast %11 : vector<32x128xi1> to vector<32x128xi1>
    %13 = arith.xori %9, %12 : vector<32x128xi1>
    %14 = arith.andi %13, %7 : vector<32x128xi1>
    %15 = vector.broadcast %3 : i32 to vector<32x128xi32>
    %16 = arith.addi %5, %15 : vector<32x128xi32>
    %17 = arith.select %14, %16, %5 : vector<32x128xi1>, vector<32x128xi32>
    %c0_i32_4 = arith.constant 0 : i32
    %18 = vector.broadcast %c0_i32_4 : i32 to vector<32x128xi32>
    %19 = arith.cmpi eq, %17, %18 : vector<32x128xi32>
    %c15_i32 = arith.constant 15 : i32
    %20 = vector.broadcast %c15_i32 : i32 to vector<32x128xi32>
    %21 = arith.cmpi eq, %17, %20 : vector<32x128xi32>
    %22 = vector.extract_strided_slice %0 {offsets = [31, 0], sizes = [1, 128], strides = [1, 1]} : vector<32x128xf32> to vector<1x128xf32>
    %23 = vector.extract_strided_slice %0 {offsets = [0, 0], sizes = [31, 128], strides = [1, 1]} : vector<32x128xf32> to vector<31x128xf32>
    %24 = tpu.concatenate %22, %23 in 0 : vector<1x128xf32>, vector<31x128xf32> -> vector<32x128xf32>
    %25 = vector.extract_strided_slice %0 {offsets = [1, 0], sizes = [31, 128], strides = [1, 1]} : vector<32x128xf32> to vector<31x128xf32>
    %26 = vector.extract_strided_slice %0 {offsets = [0, 0], sizes = [1, 128], strides = [1, 1]} : vector<32x128xf32> to vector<1x128xf32>
    %27 = tpu.concatenate %25, %26 in 0 : vector<31x128xf32>, vector<1x128xf32> -> vector<32x128xf32>
    %28 = arith.select %19, %27, %24 : vector<32x128xi1>, vector<32x128xf32>
    %29 = arith.select %21, %24, %27 : vector<32x128xi1>, vector<32x128xf32>
    %30 = arith.truncf %28 : vector<32x128xf32> to vector<32x128xbf16>
    %c0_5 = arith.constant 0 : index
    %c0_6 = arith.constant 0 : index
    %c0_7 = arith.constant 0 : index
    %c0_8 = arith.constant 0 : index
    %31 = vector.load %arg2[%c0_5, %c0_6, %c0_7, %c0_8] : memref<2x3x128x128xbf16, #tpu.memory_space<vmem>>, vector<1x1x128x128xbf16>
    %32 = vector.shape_cast %31 : vector<1x1x128x128xbf16> to vector<128x128xbf16>
    %cst = arith.constant dense<0.000000e+00> : vector<32x128xf32>
    %33 = tpu.matmul %30, %32, %cst {dimension_numbers = #tpu.dot_dimension_numbers<[1], [0], [0], [1], [0, 0, 1, 1], [], []>} : vector<32x128xbf16>, vector<128x128xbf16>, vector<32x128xf32> -> vector<32x128xf32>
    %34 = arith.truncf %0 : vector<32x128xf32> to vector<32x128xbf16>
    %c0_9 = arith.constant 0 : index
    %c1 = arith.constant 1 : index
    %c0_10 = arith.constant 0 : index
    %c0_11 = arith.constant 0 : index
    %35 = vector.load %arg2[%c0_9, %c1, %c0_10, %c0_11] : memref<2x3x128x128xbf16, #tpu.memory_space<vmem>>, vector<1x1x128x128xbf16>
    %36 = vector.shape_cast %35 : vector<1x1x128x128xbf16> to vector<128x128xbf16>
    %cst_12 = arith.constant dense<0.000000e+00> : vector<32x128xf32>
    %37 = tpu.matmul %34, %36, %cst_12 {dimension_numbers = #tpu.dot_dimension_numbers<[1], [0], [0], [1], [0, 0, 1, 1], [], []>} : vector<32x128xbf16>, vector<128x128xbf16>, vector<32x128xf32> -> vector<32x128xf32>
    %38 = arith.addf %33, %37 : vector<32x128xf32>
    %39 = arith.truncf %29 : vector<32x128xf32> to vector<32x128xbf16>
    %c0_13 = arith.constant 0 : index
    %c2 = arith.constant 2 : index
    %c0_14 = arith.constant 0 : index
    %c0_15 = arith.constant 0 : index
    %40 = vector.load %arg2[%c0_13, %c2, %c0_14, %c0_15] : memref<2x3x128x128xbf16, #tpu.memory_space<vmem>>, vector<1x1x128x128xbf16>
    %41 = vector.shape_cast %40 : vector<1x1x128x128xbf16> to vector<128x128xbf16>
    %cst_16 = arith.constant dense<0.000000e+00> : vector<32x128xf32>
    %42 = tpu.matmul %39, %41, %cst_16 {dimension_numbers = #tpu.dot_dimension_numbers<[1], [0], [0], [1], [0, 0, 1, 1], [], []>} : vector<32x128xbf16>, vector<128x128xbf16>, vector<32x128xf32> -> vector<32x128xf32>
    %43 = arith.addf %38, %42 : vector<32x128xf32>
    %44 = vector.extract_strided_slice %43 {offsets = [0, 0], sizes = [16, 128], strides = [1, 1]} : vector<32x128xf32> to vector<16x128xf32>
    %cst_17 = arith.constant dense<0.000000e+00> : vector<128xf32>
    %45 = vector.multi_reduction <add>, %44, %cst_17 [0] : vector<16x128xf32> to vector<128xf32>
    %46 = vector.shape_cast %45 : vector<128xf32> to vector<1x128xf32>
    %47 = arith.mulf %44, %44 : vector<16x128xf32>
    %cst_18 = arith.constant dense<0.000000e+00> : vector<128xf32>
    %48 = vector.multi_reduction <add>, %47, %cst_18 [0] : vector<16x128xf32> to vector<128xf32>
    %49 = vector.shape_cast %48 : vector<128xf32> to vector<1x128xf32>
    %c8_i32 = arith.constant 8 : i32
    %50 = tpu.dynamic_rotate %46 by %c8_i32 dim 1 : vector<1x128xf32>, i32 -> vector<1x128xf32>
    %51 = arith.addf %46, %50 : vector<1x128xf32>
    %c8_i32_19 = arith.constant 8 : i32
    %52 = tpu.dynamic_rotate %49 by %c8_i32_19 dim 1 : vector<1x128xf32>, i32 -> vector<1x128xf32>
    %53 = arith.addf %49, %52 : vector<1x128xf32>
    %c16_i32_20 = arith.constant 16 : i32
    %54 = tpu.dynamic_rotate %51 by %c16_i32_20 dim 1 : vector<1x128xf32>, i32 -> vector<1x128xf32>
    %55 = arith.addf %51, %54 : vector<1x128xf32>
    %c16_i32_21 = arith.constant 16 : i32
    %56 = tpu.dynamic_rotate %53 by %c16_i32_21 dim 1 : vector<1x128xf32>, i32 -> vector<1x128xf32>
    %57 = arith.addf %53, %56 : vector<1x128xf32>
    %c32_i32 = arith.constant 32 : i32
    %58 = tpu.dynamic_rotate %55 by %c32_i32 dim 1 : vector<1x128xf32>, i32 -> vector<1x128xf32>
    %59 = arith.addf %55, %58 : vector<1x128xf32>
    %c32_i32_22 = arith.constant 32 : i32
    %60 = tpu.dynamic_rotate %57 by %c32_i32_22 dim 1 : vector<1x128xf32>, i32 -> vector<1x128xf32>
    %61 = arith.addf %57, %60 : vector<1x128xf32>
    %c64_i32 = arith.constant 64 : i32
    %62 = tpu.dynamic_rotate %59 by %c64_i32 dim 1 : vector<1x128xf32>, i32 -> vector<1x128xf32>
    %63 = arith.addf %59, %62 : vector<1x128xf32>
    %c64_i32_23 = arith.constant 64 : i32
    %64 = tpu.dynamic_rotate %61 by %c64_i32_23 dim 1 : vector<1x128xf32>, i32 -> vector<1x128xf32>
    %65 = arith.addf %61, %64 : vector<1x128xf32>
    %cst_24 = arith.constant 3.906250e-03 : f32
    %66 = vector.broadcast %cst_24 : f32 to vector<1x128xf32>
    %67 = arith.mulf %63, %66 : vector<1x128xf32>
    %cst_25 = arith.constant 3.906250e-03 : f32
    %68 = vector.broadcast %cst_25 : f32 to vector<1x128xf32>
    %69 = arith.mulf %65, %68 : vector<1x128xf32>
    %70 = arith.mulf %67, %67 : vector<1x128xf32>
    %71 = arith.subf %69, %70 : vector<1x128xf32>
    %cst_26 = arith.constant 0.000000e+00 : f32
    %72 = vector.broadcast %cst_26 : f32 to vector<1x128xf32>
    %73 = arith.maximumf %71, %72 : vector<1x128xf32>
    %74 = vector.broadcast %67 : vector<1x128xf32> to vector<16x128xf32>
    %75 = arith.subf %44, %74 : vector<16x128xf32>
    %cst_27 = arith.constant 9.99999974E-6 : f32
    %76 = vector.broadcast %cst_27 : f32 to vector<1x128xf32>
    %77 = arith.addf %73, %76 : vector<1x128xf32>
    %78 = math.rsqrt %77 : vector<1x128xf32>
    %79 = vector.broadcast %78 : vector<1x128xf32> to vector<16x128xf32>
    %80 = arith.mulf %75, %79 : vector<16x128xf32>
    %cst_28 = arith.constant 0.000000e+00 : f32
    %81 = vector.broadcast %cst_28 : f32 to vector<16x128xf32>
    %82 = arith.maximumf %80, %81 : vector<16x128xf32>
    %83 = vector.extract_strided_slice %43 {offsets = [16, 0], sizes = [16, 128], strides = [1, 1]} : vector<32x128xf32> to vector<16x128xf32>
    %cst_29 = arith.constant dense<0.000000e+00> : vector<128xf32>
    %84 = vector.multi_reduction <add>, %83, %cst_29 [0] : vector<16x128xf32> to vector<128xf32>
    %85 = vector.shape_cast %84 : vector<128xf32> to vector<1x128xf32>
    %86 = arith.mulf %83, %83 : vector<16x128xf32>
    %cst_30 = arith.constant dense<0.000000e+00> : vector<128xf32>
    %87 = vector.multi_reduction <add>, %86, %cst_30 [0] : vector<16x128xf32> to vector<128xf32>
    %88 = vector.shape_cast %87 : vector<128xf32> to vector<1x128xf32>
    %c8_i32_31 = arith.constant 8 : i32
    %89 = tpu.dynamic_rotate %85 by %c8_i32_31 dim 1 : vector<1x128xf32>, i32 -> vector<1x128xf32>
    %90 = arith.addf %85, %89 : vector<1x128xf32>
    %c8_i32_32 = arith.constant 8 : i32
    %91 = tpu.dynamic_rotate %88 by %c8_i32_32 dim 1 : vector<1x128xf32>, i32 -> vector<1x128xf32>
    %92 = arith.addf %88, %91 : vector<1x128xf32>
    %c16_i32_33 = arith.constant 16 : i32
    %93 = tpu.dynamic_rotate %90 by %c16_i32_33 dim 1 : vector<1x128xf32>, i32 -> vector<1x128xf32>
    %94 = arith.addf %90, %93 : vector<1x128xf32>
    %c16_i32_34 = arith.constant 16 : i32
    %95 = tpu.dynamic_rotate %92 by %c16_i32_34 dim 1 : vector<1x128xf32>, i32 -> vector<1x128xf32>
    %96 = arith.addf %92, %95 : vector<1x128xf32>
    %c32_i32_35 = arith.constant 32 : i32
    %97 = tpu.dynamic_rotate %94 by %c32_i32_35 dim 1 : vector<1x128xf32>, i32 -> vector<1x128xf32>
    %98 = arith.addf %94, %97 : vector<1x128xf32>
    %c32_i32_36 = arith.constant 32 : i32
    %99 = tpu.dynamic_rotate %96 by %c32_i32_36 dim 1 : vector<1x128xf32>, i32 -> vector<1x128xf32>
    %100 = arith.addf %96, %99 : vector<1x128xf32>
    %c64_i32_37 = arith.constant 64 : i32
    %101 = tpu.dynamic_rotate %98 by %c64_i32_37 dim 1 : vector<1x128xf32>, i32 -> vector<1x128xf32>
    %102 = arith.addf %98, %101 : vector<1x128xf32>
    %c64_i32_38 = arith.constant 64 : i32
    %103 = tpu.dynamic_rotate %100 by %c64_i32_38 dim 1 : vector<1x128xf32>, i32 -> vector<1x128xf32>
    %104 = arith.addf %100, %103 : vector<1x128xf32>
    %cst_39 = arith.constant 3.906250e-03 : f32
    %105 = vector.broadcast %cst_39 : f32 to vector<1x128xf32>
    %106 = arith.mulf %102, %105 : vector<1x128xf32>
    %cst_40 = arith.constant 3.906250e-03 : f32
    %107 = vector.broadcast %cst_40 : f32 to vector<1x128xf32>
    %108 = arith.mulf %104, %107 : vector<1x128xf32>
    %109 = arith.mulf %106, %106 : vector<1x128xf32>
    %110 = arith.subf %108, %109 : vector<1x128xf32>
    %cst_41 = arith.constant 0.000000e+00 : f32
    %111 = vector.broadcast %cst_41 : f32 to vector<1x128xf32>
    %112 = arith.maximumf %110, %111 : vector<1x128xf32>
    %113 = vector.broadcast %106 : vector<1x128xf32> to vector<16x128xf32>
    %114 = arith.subf %83, %113 : vector<16x128xf32>
    %cst_42 = arith.constant 9.99999974E-6 : f32
    %115 = vector.broadcast %cst_42 : f32 to vector<1x128xf32>
    %116 = arith.addf %112, %115 : vector<1x128xf32>
    %117 = math.rsqrt %116 : vector<1x128xf32>
    %118 = vector.broadcast %117 : vector<1x128xf32> to vector<16x128xf32>
    %119 = arith.mulf %114, %118 : vector<16x128xf32>
    %cst_43 = arith.constant 0.000000e+00 : f32
    %120 = vector.broadcast %cst_43 : f32 to vector<16x128xf32>
    %121 = arith.maximumf %119, %120 : vector<16x128xf32>
    %122 = tpu.concatenate %82, %121 in 0 : vector<16x128xf32>, vector<16x128xf32> -> vector<32x128xf32>
    %123 = vector.extract_strided_slice %122 {offsets = [31, 0], sizes = [1, 128], strides = [1, 1]} : vector<32x128xf32> to vector<1x128xf32>
    %124 = vector.extract_strided_slice %122 {offsets = [0, 0], sizes = [31, 128], strides = [1, 1]} : vector<32x128xf32> to vector<31x128xf32>
    %125 = tpu.concatenate %123, %124 in 0 : vector<1x128xf32>, vector<31x128xf32> -> vector<32x128xf32>
    %126 = vector.extract_strided_slice %122 {offsets = [1, 0], sizes = [31, 128], strides = [1, 1]} : vector<32x128xf32> to vector<31x128xf32>
    %127 = vector.extract_strided_slice %122 {offsets = [0, 0], sizes = [1, 128], strides = [1, 1]} : vector<32x128xf32> to vector<1x128xf32>
    %128 = tpu.concatenate %126, %127 in 0 : vector<31x128xf32>, vector<1x128xf32> -> vector<32x128xf32>
    %129 = arith.select %19, %128, %125 : vector<32x128xi1>, vector<32x128xf32>
    %130 = arith.select %21, %125, %128 : vector<32x128xi1>, vector<32x128xf32>
    %131 = arith.truncf %129 : vector<32x128xf32> to vector<32x128xbf16>
    %c1_44 = arith.constant 1 : index
    %c0_45 = arith.constant 0 : index
    %c0_46 = arith.constant 0 : index
    %c0_47 = arith.constant 0 : index
    %132 = vector.load %arg2[%c1_44, %c0_45, %c0_46, %c0_47] : memref<2x3x128x128xbf16, #tpu.memory_space<vmem>>, vector<1x1x128x128xbf16>
    %133 = vector.shape_cast %132 : vector<1x1x128x128xbf16> to vector<128x128xbf16>
    %cst_48 = arith.constant dense<0.000000e+00> : vector<32x128xf32>
    %134 = tpu.matmul %131, %133, %cst_48 {dimension_numbers = #tpu.dot_dimension_numbers<[1], [0], [0], [1], [0, 0, 1, 1], [], []>} : vector<32x128xbf16>, vector<128x128xbf16>, vector<32x128xf32> -> vector<32x128xf32>
    %135 = arith.truncf %122 : vector<32x128xf32> to vector<32x128xbf16>
    %c1_49 = arith.constant 1 : index
    %c1_50 = arith.constant 1 : index
    %c0_51 = arith.constant 0 : index
    %c0_52 = arith.constant 0 : index
    %136 = vector.load %arg2[%c1_49, %c1_50, %c0_51, %c0_52] : memref<2x3x128x128xbf16, #tpu.memory_space<vmem>>, vector<1x1x128x128xbf16>
    %137 = vector.shape_cast %136 : vector<1x1x128x128xbf16> to vector<128x128xbf16>
    %cst_53 = arith.constant dense<0.000000e+00> : vector<32x128xf32>
    %138 = tpu.matmul %135, %137, %cst_53 {dimension_numbers = #tpu.dot_dimension_numbers<[1], [0], [0], [1], [0, 0, 1, 1], [], []>} : vector<32x128xbf16>, vector<128x128xbf16>, vector<32x128xf32> -> vector<32x128xf32>
    %139 = arith.addf %134, %138 : vector<32x128xf32>
    %140 = arith.truncf %130 : vector<32x128xf32> to vector<32x128xbf16>
    %c1_54 = arith.constant 1 : index
    %c2_55 = arith.constant 2 : index
    %c0_56 = arith.constant 0 : index
    %c0_57 = arith.constant 0 : index
    %141 = vector.load %arg2[%c1_54, %c2_55, %c0_56, %c0_57] : memref<2x3x128x128xbf16, #tpu.memory_space<vmem>>, vector<1x1x128x128xbf16>
    %142 = vector.shape_cast %141 : vector<1x1x128x128xbf16> to vector<128x128xbf16>
    %cst_58 = arith.constant dense<0.000000e+00> : vector<32x128xf32>
    %143 = tpu.matmul %140, %142, %cst_58 {dimension_numbers = #tpu.dot_dimension_numbers<[1], [0], [0], [1], [0, 0, 1, 1], [], []>} : vector<32x128xbf16>, vector<128x128xbf16>, vector<32x128xf32> -> vector<32x128xf32>
    %144 = arith.addf %139, %143 : vector<32x128xf32>
    %145 = vector.extract_strided_slice %144 {offsets = [0, 0], sizes = [16, 128], strides = [1, 1]} : vector<32x128xf32> to vector<16x128xf32>
    %cst_59 = arith.constant dense<0.000000e+00> : vector<128xf32>
    %146 = vector.multi_reduction <add>, %145, %cst_59 [0] : vector<16x128xf32> to vector<128xf32>
    %147 = vector.shape_cast %146 : vector<128xf32> to vector<1x128xf32>
    %148 = arith.mulf %145, %145 : vector<16x128xf32>
    %cst_60 = arith.constant dense<0.000000e+00> : vector<128xf32>
    %149 = vector.multi_reduction <add>, %148, %cst_60 [0] : vector<16x128xf32> to vector<128xf32>
    %150 = vector.shape_cast %149 : vector<128xf32> to vector<1x128xf32>
    %c8_i32_61 = arith.constant 8 : i32
    %151 = tpu.dynamic_rotate %147 by %c8_i32_61 dim 1 : vector<1x128xf32>, i32 -> vector<1x128xf32>
    %152 = arith.addf %147, %151 : vector<1x128xf32>
    %c8_i32_62 = arith.constant 8 : i32
    %153 = tpu.dynamic_rotate %150 by %c8_i32_62 dim 1 : vector<1x128xf32>, i32 -> vector<1x128xf32>
    %154 = arith.addf %150, %153 : vector<1x128xf32>
    %c16_i32_63 = arith.constant 16 : i32
    %155 = tpu.dynamic_rotate %152 by %c16_i32_63 dim 1 : vector<1x128xf32>, i32 -> vector<1x128xf32>
    %156 = arith.addf %152, %155 : vector<1x128xf32>
    %c16_i32_64 = arith.constant 16 : i32
    %157 = tpu.dynamic_rotate %154 by %c16_i32_64 dim 1 : vector<1x128xf32>, i32 -> vector<1x128xf32>
    %158 = arith.addf %154, %157 : vector<1x128xf32>
    %c32_i32_65 = arith.constant 32 : i32
    %159 = tpu.dynamic_rotate %156 by %c32_i32_65 dim 1 : vector<1x128xf32>, i32 -> vector<1x128xf32>
    %160 = arith.addf %156, %159 : vector<1x128xf32>
    %c32_i32_66 = arith.constant 32 : i32
    %161 = tpu.dynamic_rotate %158 by %c32_i32_66 dim 1 : vector<1x128xf32>, i32 -> vector<1x128xf32>
    %162 = arith.addf %158, %161 : vector<1x128xf32>
    %c64_i32_67 = arith.constant 64 : i32
    %163 = tpu.dynamic_rotate %160 by %c64_i32_67 dim 1 : vector<1x128xf32>, i32 -> vector<1x128xf32>
    %164 = arith.addf %160, %163 : vector<1x128xf32>
    %c64_i32_68 = arith.constant 64 : i32
    %165 = tpu.dynamic_rotate %162 by %c64_i32_68 dim 1 : vector<1x128xf32>, i32 -> vector<1x128xf32>
    %166 = arith.addf %162, %165 : vector<1x128xf32>
    %cst_69 = arith.constant 3.906250e-03 : f32
    %167 = vector.broadcast %cst_69 : f32 to vector<1x128xf32>
    %168 = arith.mulf %164, %167 : vector<1x128xf32>
    %cst_70 = arith.constant 3.906250e-03 : f32
    %169 = vector.broadcast %cst_70 : f32 to vector<1x128xf32>
    %170 = arith.mulf %166, %169 : vector<1x128xf32>
    %171 = arith.mulf %168, %168 : vector<1x128xf32>
    %172 = arith.subf %170, %171 : vector<1x128xf32>
    %cst_71 = arith.constant 0.000000e+00 : f32
    %173 = vector.broadcast %cst_71 : f32 to vector<1x128xf32>
    %174 = arith.maximumf %172, %173 : vector<1x128xf32>
    %175 = vector.broadcast %168 : vector<1x128xf32> to vector<16x128xf32>
    %176 = arith.subf %145, %175 : vector<16x128xf32>
    %cst_72 = arith.constant 9.99999974E-6 : f32
    %177 = vector.broadcast %cst_72 : f32 to vector<1x128xf32>
    %178 = arith.addf %174, %177 : vector<1x128xf32>
    %179 = math.rsqrt %178 : vector<1x128xf32>
    %180 = vector.broadcast %179 : vector<1x128xf32> to vector<16x128xf32>
    %181 = arith.mulf %176, %180 : vector<16x128xf32>
    %cst_73 = arith.constant 0.000000e+00 : f32
    %182 = vector.broadcast %cst_73 : f32 to vector<16x128xf32>
    %183 = arith.maximumf %181, %182 : vector<16x128xf32>
    %184 = vector.extract_strided_slice %144 {offsets = [16, 0], sizes = [16, 128], strides = [1, 1]} : vector<32x128xf32> to vector<16x128xf32>
    %cst_74 = arith.constant dense<0.000000e+00> : vector<128xf32>
    %185 = vector.multi_reduction <add>, %184, %cst_74 [0] : vector<16x128xf32> to vector<128xf32>
    %186 = vector.shape_cast %185 : vector<128xf32> to vector<1x128xf32>
    %187 = arith.mulf %184, %184 : vector<16x128xf32>
    %cst_75 = arith.constant dense<0.000000e+00> : vector<128xf32>
    %188 = vector.multi_reduction <add>, %187, %cst_75 [0] : vector<16x128xf32> to vector<128xf32>
    %189 = vector.shape_cast %188 : vector<128xf32> to vector<1x128xf32>
    %c8_i32_76 = arith.constant 8 : i32
    %190 = tpu.dynamic_rotate %186 by %c8_i32_76 dim 1 : vector<1x128xf32>, i32 -> vector<1x128xf32>
    %191 = arith.addf %186, %190 : vector<1x128xf32>
    %c8_i32_77 = arith.constant 8 : i32
    %192 = tpu.dynamic_rotate %189 by %c8_i32_77 dim 1 : vector<1x128xf32>, i32 -> vector<1x128xf32>
    %193 = arith.addf %189, %192 : vector<1x128xf32>
    %c16_i32_78 = arith.constant 16 : i32
    %194 = tpu.dynamic_rotate %191 by %c16_i32_78 dim 1 : vector<1x128xf32>, i32 -> vector<1x128xf32>
    %195 = arith.addf %191, %194 : vector<1x128xf32>
    %c16_i32_79 = arith.constant 16 : i32
    %196 = tpu.dynamic_rotate %193 by %c16_i32_79 dim 1 : vector<1x128xf32>, i32 -> vector<1x128xf32>
    %197 = arith.addf %193, %196 : vector<1x128xf32>
    %c32_i32_80 = arith.constant 32 : i32
    %198 = tpu.dynamic_rotate %195 by %c32_i32_80 dim 1 : vector<1x128xf32>, i32 -> vector<1x128xf32>
    %199 = arith.addf %195, %198 : vector<1x128xf32>
    %c32_i32_81 = arith.constant 32 : i32
    %200 = tpu.dynamic_rotate %197 by %c32_i32_81 dim 1 : vector<1x128xf32>, i32 -> vector<1x128xf32>
    %201 = arith.addf %197, %200 : vector<1x128xf32>
    %c64_i32_82 = arith.constant 64 : i32
    %202 = tpu.dynamic_rotate %199 by %c64_i32_82 dim 1 : vector<1x128xf32>, i32 -> vector<1x128xf32>
    %203 = arith.addf %199, %202 : vector<1x128xf32>
    %c64_i32_83 = arith.constant 64 : i32
    %204 = tpu.dynamic_rotate %201 by %c64_i32_83 dim 1 : vector<1x128xf32>, i32 -> vector<1x128xf32>
    %205 = arith.addf %201, %204 : vector<1x128xf32>
    %cst_84 = arith.constant 3.906250e-03 : f32
    %206 = vector.broadcast %cst_84 : f32 to vector<1x128xf32>
    %207 = arith.mulf %203, %206 : vector<1x128xf32>
    %cst_85 = arith.constant 3.906250e-03 : f32
    %208 = vector.broadcast %cst_85 : f32 to vector<1x128xf32>
    %209 = arith.mulf %205, %208 : vector<1x128xf32>
    %210 = arith.mulf %207, %207 : vector<1x128xf32>
    %211 = arith.subf %209, %210 : vector<1x128xf32>
    %cst_86 = arith.constant 0.000000e+00 : f32
    %212 = vector.broadcast %cst_86 : f32 to vector<1x128xf32>
    %213 = arith.maximumf %211, %212 : vector<1x128xf32>
    %214 = vector.broadcast %207 : vector<1x128xf32> to vector<16x128xf32>
    %215 = arith.subf %184, %214 : vector<16x128xf32>
    %cst_87 = arith.constant 9.99999974E-6 : f32
    %216 = vector.broadcast %cst_87 : f32 to vector<1x128xf32>
    %217 = arith.addf %213, %216 : vector<1x128xf32>
    %218 = math.rsqrt %217 : vector<1x128xf32>
    %219 = vector.broadcast %218 : vector<1x128xf32> to vector<16x128xf32>
    %220 = arith.mulf %215, %219 : vector<16x128xf32>
    %cst_88 = arith.constant 0.000000e+00 : f32
    %221 = vector.broadcast %cst_88 : f32 to vector<16x128xf32>
    %222 = arith.maximumf %220, %221 : vector<16x128xf32>
    %223 = tpu.concatenate %183, %222 in 0 : vector<16x128xf32>, vector<16x128xf32> -> vector<32x128xf32>
    %224 = arith.addf %223, %0 : vector<32x128xf32>
    %c0_89 = arith.constant 0 : index
    %c0_90 = arith.constant 0 : index
    %225 = vector.load %arg3[%c0_89, %c0_90] : memref<32x128xf32, #tpu.memory_space<vmem>>, vector<32x128xf32>
    tpu.vector_store %arg3[%c0_89, %c0_90], %224 {strides = array<i32>} : memref<32x128xf32, #tpu.memory_space<vmem>>, vector<32x128xf32>,
    return
  }
  func.func @transform_0(%arg0: i32) -> (i32, i32) {
    %c0_i32 = arith.constant 0 : i32
    %c0_i32_0 = arith.constant 0 : i32
    return %arg0, %c0_i32 : i32, i32
  }
  func.func @transform_1(%arg0: i32) -> (i32, i32, i32, i32) {
    %c0_i32 = arith.constant 0 : i32
    %c0_i32_0 = arith.constant 0 : i32
    %c0_i32_1 = arith.constant 0 : i32
    %c0_i32_2 = arith.constant 0 : i32
    %c0_i32_3 = arith.constant 0 : i32
    return %c0_i32, %c0_i32_0, %c0_i32_1, %c0_i32_2 : i32, i32, i32, i32
  }
  func.func @transform_2(%arg0: i32) -> (i32, i32) {
    %c0_i32 = arith.constant 0 : i32
    %c0_i32_0 = arith.constant 0 : i32
    return %arg0, %c0_i32 : i32, i32
  }
}

</mosaic_0001>

<llo_original>
// kernel: tpu_custom_call.1
$region0: #{tpu_custom_call.1}
  #allocation0 [shape = 'u32[]', space=smem, size = 0x4, offset = 0x4, fixed_abs, tag = 'smem constant byte address 0x4 - core index']
  #allocation1 [shape = 'u32[144,128]{1,0:T(1,128)}', space=vmem, size = 0x12000, scoped, tag = 'internal scratch']
  %s0 = inlined_call_operand.hbm [shape: f32[32,128], index: 0, kind: input, shape index: {}]
  %s1 = inlined_call_operand.hbm [shape: bf16[2,3,128,128], index: 1, kind: input, shape index: {}]
  %s2 = inlined_call_operand.hbm [shape: f32[32,128], index: 2, kind: output, shape index: {}]
  %s3 = sld [smem:[#allocation0]]
  $region26: #{tpu_custom_call.1} parent=0
    _
  %s5 = ssub.s32 1, %s3
  %s6 = scalar_select 0, %s5, %s3
  $region1: #{tpu_custom_call.1} parent=0
    #allocation2 [shape = 'u8[16384]{0}', space=vmem, size = 0x4000, scoped, tag = 'input window, operand 0, single buffered']
    #allocation3 [shape = 's32[1]{0}', space=sflag, size = 0x4, scoped, tag = 'scoped memory for tpu_custom_call.1']
    #allocation4 [shape = 's32[1]{0}', space=sflag, size = 0x4, scoped, tag = 'scoped memory for tpu_custom_call.1']
    #allocation5 [shape = 'u8[196608]{0}', space=vmem, size = 0x30000, scoped, tag = 'input window, operand 1, single buffered']
    #allocation6 [shape = 's32[1]{0}', space=sflag, size = 0x4, scoped, tag = 'scoped memory for tpu_custom_call.1']
    #allocation7 [shape = 'u8[16384]{0}', space=vmem, size = 0x4000, scoped, tag = 'output window, operand 0, single buffered']
    %7 = vsyncpa [#allocation3], 0
    %8 = vsyncpa [#allocation6], 0
    %9 = vsyncpa [#allocation4], 0
    // Predicated region
    $region2: #{tpu_custom_call.1} parent=1 // pred_check
      _
    $region3: #{tpu_custom_call.1} parent=1 // pred_check_branch
      %11 = sbr.rel (0) target = $region5
    $region4: #{tpu_custom_call.1} parent=1 // pred_region
      %s13 = ssub.s32 512, 512
      %14 = vsyncadd [#allocation3], %s13
      %s15 = sshll.u32 [#allocation2], 4
      %s16 = int_to_ptr.vmem [resolvable:$true] %s15
      %21 = dma.hbm_to_vmem [thread:$0]  %s0, 512, %s16, [#allocation3], 128, 128, 8
    $region5: #{tpu_custom_call.1} parent=1 // pred_fallthru
      _
    // Predicated region
    $region6: #{tpu_custom_call.1} parent=1 // pred_check
      _
    $region7: #{tpu_custom_call.1} parent=1 // pred_check_branch
      %23 = sbr.rel (0) target = $region9
    $region8: #{tpu_custom_call.1} parent=1 // pred_region
      %s25 = ssub.s32 6144, 6144
      %26 = vsyncadd [#allocation6], %s25
      %s27 = sshll.u32 [#allocation5], 4
      %s28 = int_to_ptr.vmem [resolvable:$true] %s27
      %33 = dma.hbm_to_vmem [thread:$0]  %s1, 6144, %s28, [#allocation6], 64, 64, 4
    $region9: #{tpu_custom_call.1} parent=1 // pred_fallthru
      _
    // Predicated region
    $region10: #{tpu_custom_call.1} parent=1 // pred_check
      _
    $region11: #{tpu_custom_call.1} parent=1 // pred_check_branch
      %35 = sbr.rel (0) target = $region13
    $region12: #{tpu_custom_call.1} parent=1 // pred_region
      %36 = dma.done [#allocation3], 512
    $region13: #{tpu_custom_call.1} parent=1 // pred_fallthru
      _
    // Predicated region
    $region14: #{tpu_custom_call.1} parent=1 // pred_check
      _
    $region15: #{tpu_custom_call.1} parent=1 // pred_check_branch
      %38 = sbr.rel (0) target = $region17
    $region16: #{tpu_custom_call.1} parent=1 // pred_region
      %39 = dma.done [#allocation6], 6144
    $region17: #{tpu_custom_call.1} parent=1 // pred_fallthru
      _
    %v41 = vld [vmem:[#allocation2] sm:$0xff]
    %v42 = vld [vmem:[#allocation2 + $0x8] sm:$0xff]
    %v43 = vld [vmem:[#allocation2 + $0x10] sm:$0xff]
    %v44 = vld [vmem:[#allocation2 + $0x18] sm:$0xff]
    %v45 = vlaneseq
    %v46 = vshrl.u32 %v45, 7
    %v47 = vadd.s32 %v46, 8
    %v48 = vadd.s32 %v46, 16
    %v49 = vadd.s32 %v46, 24
    %vm50 = vcmp.lt.s32.totalorder %v46, 0
    %v51 = vsub.s32 0, %v46
    %v52 = vsel %vm50, %v51, %v46
    %v53 = vshrl.u32 %v52, 4
    %v54 = vand.u32 %v52, 15
    %v55 = vsub.s32 0, %v54
    %v56 = vsel %vm50, %v55, %v54
    %vm57 = vcmp.lt.s32.totalorder %v47, 0
    %v58 = vsub.s32 0, %v47
    %v59 = vsel %vm57, %v58, %v47
    %v60 = vshrl.u32 %v59, 4
    %v61 = vand.u32 %v59, 15
    %v62 = vsub.s32 0, %v61
    %v63 = vsel %vm57, %v62, %v61
    %vm64 = vcmp.lt.s32.totalorder %v48, 0
    %v65 = vsub.s32 0, %v48
    %v66 = vsel %vm64, %v65, %v48
    %v67 = vshrl.u32 %v66, 4
    %v68 = vand.u32 %v66, 15
    %v69 = vsub.s32 0, %v68
    %v70 = vsel %vm64, %v69, %v68
    %vm71 = vcmp.lt.s32.totalorder %v49, 0
    %v72 = vsub.s32 0, %v49
    %v73 = vsel %vm71, %v72, %v49
    %v74 = vshrl.u32 %v73, 4
    %v75 = vand.u32 %v73, 15
    %v76 = vsub.s32 0, %v75
    %v77 = vsel %vm71, %v76, %v75
    %vm78 = vcmp.ne.s32.totalorder %v56, 0
    %vm79 = vcmp.ne.s32.totalorder %v63, 0
    %vm80 = vcmp.ne.s32.totalorder %v70, 0
    %vm81 = vcmp.ne.s32.totalorder %v77, 0
    %vm82 = vcmp.lt.s32.totalorder %v56, 0
    %vm83 = vcmp.lt.s32.totalorder %v63, 0
    %vm84 = vcmp.lt.s32.totalorder %v70, 0
    %vm85 = vcmp.lt.s32.totalorder %v77, 0
    %vm86 = vmand %vm82, %vm78
    %vm87 = vmand %vm83, %vm79
    %vm88 = vmand %vm84, %vm80
    %vm89 = vmand %vm85, %vm81
    %v90 = vadd.s32 %v56, 16
    %v91 = vadd.s32 %v63, 16
    %v92 = vadd.s32 %v70, 16
    %v93 = vadd.s32 %v77, 16
    %v94 = vsel %vm86, %v90, %v56
    %v95 = vsel %vm87, %v91, %v63
    %v96 = vsel %vm88, %v92, %v70
    %v97 = vsel %vm89, %v93, %v77
    %vm98 = vcmp.eq.s32.totalorder %v94, 0
    %vm99 = vcmp.eq.s32.totalorder %v95, 0
    %vm100 = vcmp.eq.s32.totalorder %v96, 0
    %vm101 = vcmp.eq.s32.totalorder %v97, 0
    %vm102 = vcmp.eq.s32.totalorder %v94, 15
    %vm103 = vcmp.eq.s32.totalorder %v95, 15
    %vm104 = vcmp.eq.s32.totalorder %v96, 15
    %vm105 = vcmp.eq.s32.totalorder %v97, 15
    %v107 = vrot.slane %v44, 7
    %vm112 = vcmask 1040384
    %v113 = vrot.slane %v41, 7
    %v114 = vrot.slane %v42, 7
    %v115 = vsel %vm112, %v113, %v114
    %v116 = vrot.slane %v43, 7
    %v117 = vsel %vm112, %v114, %v116
    %v118 = vsel %vm112, %v116, %v107
    %v123 = vsel %vm112, %v107, %v113
    %vm124 = vcmask 1046528
    %v125 = vrot.slane %v41, 1
    %v126 = vrot.slane %v42, 1
    %v127 = vsel %vm124, %v125, %v126
    %v128 = vrot.slane %v43, 1
    %v129 = vsel %vm124, %v126, %v128
    %v130 = vrot.slane %v44, 1
    %v131 = vsel %vm124, %v128, %v130
    %v137 = vsel %vm124, %v130, %v125
    %v138 = vsel %vm98, %v127, %v123
    %v139 = vsel %vm99, %v129, %v115
    %v140 = vsel %vm100, %v131, %v117
    %v141 = vsel %vm101, %v137, %v118
    %v142 = vsel %vm102, %v123, %v127
    %v143 = vsel %vm103, %v115, %v129
    %v144 = vsel %vm104, %v117, %v131
    %v145 = vsel %vm105, %v118, %v137
    %v146 = vpack.c.bf16 %v139, %v138
    %v147 = vpack.c.bf16 %v141, %v140
    %v148 = vld [vmem:[#allocation5] sm:$0xf]
    %v149 = vld [vmem:[#allocation5 + $0x4] sm:$0xf]
    %v150 = vld [vmem:[#allocation5 + $0x8] sm:$0xf]
    %v151 = vld [vmem:[#allocation5 + $0xc] sm:$0xf]
    %v152 = vld [vmem:[#allocation5 + $0x10] sm:$0xf]
    %v153 = vld [vmem:[#allocation5 + $0x14] sm:$0xf]
    %v154 = vld [vmem:[#allocation5 + $0x18] sm:$0xf]
    %v155 = vld [vmem:[#allocation5 + $0x1c] sm:$0xf]
    %v156 = vld [vmem:[#allocation5 + $0x20] sm:$0xf]
    %v157 = vld [vmem:[#allocation5 + $0x24] sm:$0xf]
    %v158 = vld [vmem:[#allocation5 + $0x28] sm:$0xf]
    %v159 = vld [vmem:[#allocation5 + $0x2c] sm:$0xf]
    %v160 = vld [vmem:[#allocation5 + $0x30] sm:$0xf]
    %v161 = vld [vmem:[#allocation5 + $0x34] sm:$0xf]
    %v162 = vld [vmem:[#allocation5 + $0x38] sm:$0xf]
    %v163 = vld [vmem:[#allocation5 + $0x3c] sm:$0xf]
    %v164 = vpack.c.bf16 %v42, %v41
    %v165 = vpack.c.bf16 %v44, %v43
    %s166 = scalar_lea.vmem [#allocation5], 64
    %v167 = vld [vmem:[%s166] sm:$0xf]
    %v168 = vld [vmem:[%s166 + $0x4] sm:$0xf]
    %v169 = vld [vmem:[%s166 + $0x8] sm:$0xf]
    %v170 = vld [vmem:[%s166 + $0xc] sm:$0xf]
    %v171 = vld [vmem:[%s166 + $0x10] sm:$0xf]
    %v172 = vld [vmem:[%s166 + $0x14] sm:$0xf]
    %v173 = vld [vmem:[%s166 + $0x18] sm:$0xf]
    %v174 = vld [vmem:[%s166 + $0x1c] sm:$0xf]
    %v175 = vld [vmem:[%s166 + $0x20] sm:$0xf]
    %v176 = vld [vmem:[%s166 + $0x24] sm:$0xf]
    %v177 = vld [vmem:[%s166 + $0x28] sm:$0xf]
    %v178 = vld [vmem:[%s166 + $0x2c] sm:$0xf]
    %v179 = vld [vmem:[%s166 + $0x30] sm:$0xf]
    %v180 = vld [vmem:[%s166 + $0x34] sm:$0xf]
    %v181 = vld [vmem:[%s166 + $0x38] sm:$0xf]
    %v182 = vld [vmem:[%s166 + $0x3c] sm:$0xf]
    %v199 = vunpack.c.l.b16 %v167
    %v200 = vunpack.c.l.b16 %v168
    %v201 = vunpack.c.l.b16 %v169
    %v202 = vunpack.c.l.b16 %v170
    %v203 = vunpack.c.l.b16 %v171
    %v204 = vunpack.c.l.b16 %v172
    %v205 = vunpack.c.l.b16 %v173
    %v206 = vunpack.c.l.b16 %v174
    %v207 = vunpack.c.l.b16 %v175
    %v208 = vunpack.c.l.b16 %v176
    %v209 = vunpack.c.l.b16 %v177
    %v210 = vunpack.c.l.b16 %v178
    %v211 = vunpack.c.l.b16 %v179
    %v212 = vunpack.c.l.b16 %v180
    %v213 = vunpack.c.l.b16 %v181
    %v214 = vunpack.c.l.b16 %v182
    %v215 = vpack.c.b16 %v200, %v199
    %v216 = vpack.c.b16 %v202, %v201
    %v217 = vpack.c.b16 %v204, %v203
    %v218 = vpack.c.b16 %v206, %v205
    %v219 = vpack.c.b16 %v208, %v207
    %v220 = vpack.c.b16 %v210, %v209
    %v221 = vpack.c.b16 %v212, %v211
    %v222 = vpack.c.b16 %v214, %v213
    %231 = vmatprep.subr.bf16.mxu0 0
    %232 = vmatpush1.bf16.msra.mxu0 %v215
    %233 = vmatprep.subr.bf16.mxu0 0
    %234 = vmatpush1.bf16.msra.mxu0 %v216
    %235 = vmatprep.subr.bf16.mxu0 0
    %236 = vmatpush1.bf16.msra.mxu0 %v217
    %237 = vmatprep.subr.bf16.mxu0 0
    %238 = vmatpush1.bf16.msra.mxu0 %v218
    %239 = vmatprep.subr.bf16.mxu0 0
    %240 = vmatpush1.bf16.msra.mxu0 %v219
    %241 = vmatprep.subr.bf16.mxu0 0
    %242 = vmatpush1.bf16.msra.mxu0 %v220
    %243 = vmatprep.subr.bf16.mxu0 0
    %244 = vmatpush1.bf16.msra.mxu0 %v221
    %245 = vmatprep.subr.bf16.mxu0 0
    %246 = vmatpush1.bf16.msra.mxu0 %v222
    %247 = vmatprep.subr.bf16.mxu0 0
    %248 = vmatpush1.bf16.msra.mxu0 0
    %249 = vmatprep.subr.bf16.mxu0 0
    %250 = vmatpush1.bf16.msra.mxu0 0
    %251 = vmatprep.subr.bf16.mxu0 0
    %252 = vmatpush1.bf16.msra.mxu0 0
    %253 = vmatprep.subr.bf16.mxu0 0
    %254 = vmatpush1.bf16.msra.mxu0 0
    %255 = vmatprep.subr.bf16.mxu0 0
    %256 = vmatpush1.bf16.msra.mxu0 0
    %257 = vmatprep.subr.bf16.mxu0 0
    %258 = vmatpush1.bf16.msra.mxu0 0
    %259 = vmatprep.subr.bf16.mxu0 0
    %260 = vmatpush1.bf16.msra.mxu0 0
    %261 = vmatprep.subr.bf16.mxu0 0
    %262 = vmatpush1.bf16.msra.mxu0 0
    %263 = vmatprep.mubr.bf16.mxu0 0
    %264 = vmatmul.mubr.bf16.gmra.mrb[0].mxu0 %v164
    %v265 = vpop.f32.mrb[0].mxu0
    %v266 = vadd.f32 0.0, %v265
    %v267 = vpop.f32.mrb[0].mxu0
    %v268 = vpop.f32.mrb[0].mxu0
    %v269 = vadd.f32 0.0, %v268
    %v270 = vpop.f32.mrb[0].mxu0
    %271 = vmatprep.mubr.bf16.mxu0 0
    %272 = vmatmul.mubr.bf16.gmra.mrb[0].mxu0 %v165
    %v273 = vpop.f32.mrb[0].mxu0
    %v274 = vadd.f32 0.0, %v273
    %v275 = vpop.f32.mrb[0].mxu0
    %v276 = vpop.f32.mrb[0].mxu0
    %v277 = vadd.f32 0.0, %v276
    %v278 = vpop.f32.mrb[0].mxu0
    %279 = vdwg.mxu0
    %v296 = vunpack.c.l.b16 %v148
    %v297 = vunpack.c.l.b16 %v149
    %v298 = vunpack.c.l.b16 %v150
    %v299 = vunpack.c.l.b16 %v151
    %v300 = vunpack.c.l.b16 %v152
    %v301 = vunpack.c.l.b16 %v153
    %v302 = vunpack.c.l.b16 %v154
    %v303 = vunpack.c.l.b16 %v155
    %v304 = vunpack.c.l.b16 %v156
    %v305 = vunpack.c.l.b16 %v157
    %v306 = vunpack.c.l.b16 %v158
    %v307 = vunpack.c.l.b16 %v159
    %v308 = vunpack.c.l.b16 %v160
    %v309 = vunpack.c.l.b16 %v161
    %v310 = vunpack.c.l.b16 %v162
    %v311 = vunpack.c.l.b16 %v163
    %v312 = vpack.c.b16 %v297, %v296
    %v313 = vpack.c.b16 %v299, %v298
    %v314 = vpack.c.b16 %v301, %v300
    %v315 = vpack.c.b16 %v303, %v302
    %v316 = vpack.c.b16 %v305, %v304
    %v317 = vpack.c.b16 %v307, %v306
    %v318 = vpack.c.b16 %v309, %v308
    %v319 = vpack.c.b16 %v311, %v310
    %328 = vmatprep.subr.bf16.mxu0 0
    %329 = vmatpush1.bf16.msra.mxu0 %v312
    %330 = vmatprep.subr.bf16.mxu0 0
    %331 = vmatpush1.bf16.msra.mxu0 %v313
    %332 = vmatprep.subr.bf16.mxu0 0
    %333 = vmatpush1.bf16.msra.mxu0 %v314
    %334 = vmatprep.subr.bf16.mxu0 0
    %335 = vmatpush1.bf16.msra.mxu0 %v315
    %336 = vmatprep.subr.bf16.mxu0 0
    %337 = vmatpush1.bf16.msra.mxu0 %v316
    %338 = vmatprep.subr.bf16.mxu0 0
    %339 = vmatpush1.bf16.msra.mxu0 %v317
    %340 = vmatprep.subr.bf16.mxu0 0
    %341 = vmatpush1.bf16.msra.mxu0 %v318
    %342 = vmatprep.subr.bf16.mxu0 0
    %343 = vmatpush1.bf16.msra.mxu0 %v319
    %344 = vmatprep.subr.bf16.mxu0 0
    %345 = vmatpush1.bf16.msra.mxu0 0
    %346 = vmatprep.subr.bf16.mxu0 0
    %347 = vmatpush1.bf16.msra.mxu0 0
    %348 = vmatprep.subr.bf16.mxu0 0
    %349 = vmatpush1.bf16.msra.mxu0 0
    %350 = vmatprep.subr.bf16.mxu0 0
    %351 = vmatpush1.bf16.msra.mxu0 0
    %352 = vmatprep.subr.bf16.mxu0 0
    %353 = vmatpush1.bf16.msra.mxu0 0
    %354 = vmatprep.subr.bf16.mxu0 0
    %355 = vmatpush1.bf16.msra.mxu0 0
    %356 = vmatprep.subr.bf16.mxu0 0
    %357 = vmatpush1.bf16.msra.mxu0 0
    %358 = vmatprep.subr.bf16.mxu0 0
    %359 = vmatpush1.bf16.msra.mxu0 0
    %360 = vmatprep.mubr.bf16.mxu0 0
    %361 = vmatmul.mubr.bf16.gmra.mrb[0].mxu0 %v146
    %v362 = vpop.f32.mrb[0].mxu0
    %v363 = vadd.f32 %v266, %v362
    %v364 = vpop.f32.mrb[0].mxu0
    %v365 = vpop.f32.mrb[0].mxu0
    %v366 = vadd.f32 %v269, %v365
    %v367 = vpop.f32.mrb[0].mxu0
    %368 = vmatprep.mubr.bf16.mxu0 0
    %369 = vmatmul.mubr.bf16.gmra.mrb[0].mxu0 %v147
    %v370 = vpop.f32.mrb[0].mxu0
    %v371 = vadd.f32 %v274, %v370
    %v372 = vpop.f32.mrb[0].mxu0
    %v373 = vpop.f32.mrb[0].mxu0
    %v374 = vadd.f32 %v277, %v373
    %v375 = vpop.f32.mrb[0].mxu0
    %376 = vdwg.mxu0
    %v377 = vpack.c.bf16 %v143, %v142
    %v378 = vpack.c.bf16 %v145, %v144
    %s379 = scalar_lea.vmem [#allocation5], 128
    %v380 = vld [vmem:[%s379] sm:$0xf]
    %v381 = vld [vmem:[%s379 + $0x4] sm:$0xf]
    %v382 = vld [vmem:[%s379 + $0x8] sm:$0xf]
    %v383 = vld [vmem:[%s379 + $0xc] sm:$0xf]
    %v384 = vld [vmem:[%s379 + $0x10] sm:$0xf]
    %v385 = vld [vmem:[%s379 + $0x14] sm:$0xf]
    %v386 = vld [vmem:[%s379 + $0x18] sm:$0xf]
    %v387 = vld [vmem:[%s379 + $0x1c] sm:$0xf]
    %v388 = vld [vmem:[%s379 + $0x20] sm:$0xf]
    %v389 = vld [vmem:[%s379 + $0x24] sm:$0xf]
    %v390 = vld [vmem:[%s379 + $0x28] sm:$0xf]
    %v391 = vld [vmem:[%s379 + $0x2c] sm:$0xf]
    %v392 = vld [vmem:[%s379 + $0x30] sm:$0xf]
    %v393 = vld [vmem:[%s379 + $0x34] sm:$0xf]
    %v394 = vld [vmem:[%s379 + $0x38] sm:$0xf]
    %v395 = vld [vmem:[%s379 + $0x3c] sm:$0xf]
    %v412 = vunpack.c.l.b16 %v380
    %v413 = vunpack.c.l.b16 %v381
    %v414 = vunpack.c.l.b16 %v382
    %v415 = vunpack.c.l.b16 %v383
    %v416 = vunpack.c.l.b16 %v384
    %v417 = vunpack.c.l.b16 %v385
    %v418 = vunpack.c.l.b16 %v386
    %v419 = vunpack.c.l.b16 %v387
    %v420 = vunpack.c.l.b16 %v388
    %v421 = vunpack.c.l.b16 %v389
    %v422 = vunpack.c.l.b16 %v390
    %v423 = vunpack.c.l.b16 %v391
    %v424 = vunpack.c.l.b16 %v392
    %v425 = vunpack.c.l.b16 %v393
    %v426 = vunpack.c.l.b16 %v394
    %v427 = vunpack.c.l.b16 %v395
    %v428 = vpack.c.b16 %v413, %v412
    %v429 = vpack.c.b16 %v415, %v414
    %v430 = vpack.c.b16 %v417, %v416
    %v431 = vpack.c.b16 %v419, %v418
    %v432 = vpack.c.b16 %v421, %v420
    %v433 = vpack.c.b16 %v423, %v422
    %v434 = vpack.c.b16 %v425, %v424
    %v435 = vpack.c.b16 %v427, %v426
    %444 = vmatprep.subr.bf16.mxu0 0
    %445 = vmatpush1.bf16.msra.mxu0 %v428
    %446 = vmatprep.subr.bf16.mxu0 0
    %447 = vmatpush1.bf16.msra.mxu0 %v429
    %448 = vmatprep.subr.bf16.mxu0 0
    %449 = vmatpush1.bf16.msra.mxu0 %v430
    %450 = vmatprep.subr.bf16.mxu0 0
    %451 = vmatpush1.bf16.msra.mxu0 %v431
    %452 = vmatprep.subr.bf16.mxu0 0
    %453 = vmatpush1.bf16.msra.mxu0 %v432
    %454 = vmatprep.subr.bf16.mxu0 0
    %455 = vmatpush1.bf16.msra.mxu0 %v433
    %456 = vmatprep.subr.bf16.mxu0 0
    %457 = vmatpush1.bf16.msra.mxu0 %v434
    %458 = vmatprep.subr.bf16.mxu0 0
    %459 = vmatpush1.bf16.msra.mxu0 %v435
    %460 = vmatprep.subr.bf16.mxu0 0
    %461 = vmatpush1.bf16.msra.mxu0 0
    %462 = vmatprep.subr.bf16.mxu0 0
    %463 = vmatpush1.bf16.msra.mxu0 0
    %464 = vmatprep.subr.bf16.mxu0 0
    %465 = vmatpush1.bf16.msra.mxu0 0
    %466 = vmatprep.subr.bf16.mxu0 0
    %467 = vmatpush1.bf16.msra.mxu0 0
    %468 = vmatprep.subr.bf16.mxu0 0
    %469 = vmatpush1.bf16.msra.mxu0 0
    %470 = vmatprep.subr.bf16.mxu0 0
    %471 = vmatpush1.bf16.msra.mxu0 0
    %472 = vmatprep.subr.bf16.mxu0 0
    %473 = vmatpush1.bf16.msra.mxu0 0
    %474 = vmatprep.subr.bf16.mxu0 0
    %475 = vmatpush1.bf16.msra.mxu0 0
    %476 = vmatprep.mubr.bf16.mxu0 0
    %477 = vmatmul.mubr.bf16.gmra.mrb[0].mxu0 %v377
    %v478 = vpop.f32.mrb[0].mxu0
    %v479 = vadd.f32 0.0, %v478
    %v480 = vpop.f32.mrb[0].mxu0
    %v481 = vpop.f32.mrb[0].mxu0
    %v482 = vadd.f32 0.0, %v481
    %v483 = vpop.f32.mrb[0].mxu0
    %484 = vmatprep.mubr.bf16.mxu0 0
    %485 = vmatmul.mubr.bf16.gmra.mrb[0].mxu0 %v378
    %v486 = vpop.f32.mrb[0].mxu0
    %v487 = vadd.f32 0.0, %v486
    %v488 = vpop.f32.mrb[0].mxu0
    %v489 = vpop.f32.mrb[0].mxu0
    %v490 = vadd.f32 0.0, %v489
    %v491 = vpop.f32.mrb[0].mxu0
    %492 = vdwg.mxu0
    %v493 = vadd.f32 %v363, %v479
    %v494 = vadd.f32 %v366, %v482
    %v495 = vadd.f32 %v371, %v487
    %v496 = vadd.f32 %v374, %v490
    %v497 = vadd.f32 %v493, %v494
    %v498 = vrot.slane %v497, 4
    %v499 = vadd.f32 %v497, %v498
    %v500 = vrot.slane %v499, 2
    %v501 = vadd.f32 %v499, %v500
    %v502 = vrot.slane %v501, 1
    %v503 = vadd.f32 %v501, %v502
    %v504 = vmul.f32 %v493, %v493
    %v505 = vmul.f32 %v494, %v494
    %v506 = vadd.f32 %v504, %v505
    %v507 = vrot.slane %v506, 4
    %v508 = vadd.f32 %v506, %v507
    %v509 = vrot.slane %v508, 2
    %v510 = vadd.f32 %v508, %v509
    %v511 = vrot.slane %v510, 1
    %v512 = vadd.f32 %v510, %v511
    %513 = vrot.lane.b32.xlu0 %v503, 8
    %v514 = vpop.permute.xlu0 %513
    %v515 = vadd.f32 %v503, %v514
    %516 = vrot.lane.b32.xlu0 %v512, 8
    %v517 = vpop.permute.xlu0 %516
    %v518 = vadd.f32 %v512, %v517
    %519 = vrot.lane.b32.xlu0 %v515, 16
    %v520 = vpop.permute.xlu0 %519
    %v521 = vadd.f32 %v515, %v520
    %522 = vrot.lane.b32.xlu0 %v518, 16
    %v523 = vpop.permute.xlu0 %522
    %v524 = vadd.f32 %v518, %v523
    %525 = vrot.lane.b32.xlu0 %v521, 32
    %v526 = vpop.permute.xlu0 %525
    %v527 = vadd.f32 %v521, %v526
    %528 = vrot.lane.b32.xlu0 %v524, 32
    %v529 = vpop.permute.xlu0 %528
    %v530 = vadd.f32 %v524, %v529
    %531 = vrot.lane.b32.xlu0 %v527, 64
    %v532 = vpop.permute.xlu0 %531
    %v533 = vadd.f32 %v527, %v532
    %534 = vrot.lane.b32.xlu0 %v530, 64
    %v535 = vpop.permute.xlu0 %534
    %v536 = vadd.f32 %v530, %v535
    %v537 = vmul.f32 %v533, 0.00390625
    %v538 = vmul.f32 %v536, 0.00390625
    %v539 = vmul.f32 %v537, %v537
    %v540 = vsub.f32 %v538, %v539
    %v541 = vmax.f32 %v540, 0.0
    %v542 = vlaneseq
    %v543 = vshrl.u32 %v542, 7
    %v544 = vsub.s32 0, %v543
    %v545 = vrot.slane %v537, %v544
    %v546 = vsub.f32 %v493, %v545
    %v547 = vsub.f32 %v494, %v545
    %v548 = vadd.f32 %v541, 1e-05
    %v549 = vrsqrt.pop %v548
    %v550 = vlaneseq
    %v551 = vshrl.u32 %v550, 7
    %v552 = vsub.s32 0, %v551
    %v553 = vrot.slane %v549, %v552
    %v554 = vmul.f32 %v546, %v553
    %v555 = vmul.f32 %v547, %v553
    %v556 = vmax.f32 %v554, 0.0
    %v557 = vmax.f32 %v555, 0.0
    %v558 = vadd.f32 %v495, %v496
    %v559 = vrot.slane %v558, 4
    %v560 = vadd.f32 %v558, %v559
    %v561 = vrot.slane %v560, 2
    %v562 = vadd.f32 %v560, %v561
    %v563 = vrot.slane %v562, 1
    %v564 = vadd.f32 %v562, %v563
    %v565 = vmul.f32 %v495, %v495
    %v566 = vmul.f32 %v496, %v496
    %v567 = vadd.f32 %v565, %v566
    %v568 = vrot.slane %v567, 4
    %v569 = vadd.f32 %v567, %v568
    %v570 = vrot.slane %v569, 2
    %v571 = vadd.f32 %v569, %v570
    %v572 = vrot.slane %v571, 1
    %v573 = vadd.f32 %v571, %v572
    %574 = vrot.lane.b32.xlu0 %v564, 8
    %v575 = vpop.permute.xlu0 %574
    %v576 = vadd.f32 %v564, %v575
    %577 = vrot.lane.b32.xlu0 %v573, 8
    %v578 = vpop.permute.xlu0 %577
    %v579 = vadd.f32 %v573, %v578
    %580 = vrot.lane.b32.xlu0 %v576, 16
    %v581 = vpop.permute.xlu0 %580
    %v582 = vadd.f32 %v576, %v581
    %583 = vrot.lane.b32.xlu0 %v579, 16
    %v584 = vpop.permute.xlu0 %583
    %v585 = vadd.f32 %v579, %v584
    %586 = vrot.lane.b32.xlu0 %v582, 32
    %v587 = vpop.permute.xlu0 %586
    %v588 = vadd.f32 %v582, %v587
    %589 = vrot.lane.b32.xlu0 %v585, 32
    %v590 = vpop.permute.xlu0 %589
    %v591 = vadd.f32 %v585, %v590
    %592 = vrot.lane.b32.xlu0 %v588, 64
    %v593 = vpop.permute.xlu0 %592
    %v594 = vadd.f32 %v588, %v593
    %595 = vrot.lane.b32.xlu0 %v591, 64
    %v596 = vpop.permute.xlu0 %595
    %v597 = vadd.f32 %v591, %v596
    %v598 = vmul.f32 %v594, 0.00390625
    %v599 = vmul.f32 %v597, 0.00390625
    %v600 = vmul.f32 %v598, %v598
    %v601 = vsub.f32 %v599, %v600
    %v602 = vmax.f32 %v601, 0.0
    %v603 = vlaneseq
    %v604 = vshrl.u32 %v603, 7
    %v605 = vsub.s32 0, %v604
    %v606 = vrot.slane %v598, %v605
    %v607 = vsub.f32 %v495, %v606
    %v608 = vsub.f32 %v496, %v606
    %v609 = vadd.f32 %v602, 1e-05
    %v610 = vrsqrt.pop %v609
    %v611 = vlaneseq
    %v612 = vshrl.u32 %v611, 7
    %v613 = vsub.s32 0, %v612
    %v614 = vrot.slane %v610, %v613
    %v615 = vmul.f32 %v607, %v614
    %v616 = vmul.f32 %v608, %v614
    %v617 = vmax.f32 %v615, 0.0
    %v618 = vmax.f32 %v616, 0.0
    %v620 = vrot.slane %v618, 7
    %v625 = vrot.slane %v556, 7
    %v626 = vrot.slane %v557, 7
    %v627 = vsel %vm112, %v625, %v626
    %v628 = vrot.slane %v617, 7
    %v629 = vsel %vm112, %v626, %v628
    %v630 = vsel %vm112, %v628, %v620
    %v635 = vsel %vm112, %v620, %v625
    %v636 = vrot.slane %v556, 1
    %v637 = vrot.slane %v557, 1
    %v638 = vsel %vm124, %v636, %v637
    %v639 = vrot.slane %v617, 1
    %v640 = vsel %vm124, %v637, %v639
    %v641 = vrot.slane %v618, 1
    %v642 = vsel %vm124, %v639, %v641
    %v648 = vsel %vm124, %v641, %v636
    %v649 = vsel %vm98, %v638, %v635
    %v650 = vsel %vm99, %v640, %v627
    %v651 = vsel %vm100, %v642, %v629
    %v652 = vsel %vm101, %v648, %v630
    %v653 = vsel %vm102, %v635, %v638
    %v654 = vsel %vm103, %v627, %v640
    %v655 = vsel %vm104, %v629, %v642
    %v656 = vsel %vm105, %v630, %v648
    %v657 = vpack.c.bf16 %v650, %v649
    %v658 = vpack.c.bf16 %v652, %v651
    %s659 = scalar_lea.vmem [#allocation5], 192
    %v660 = vld [vmem:[%s659] sm:$0xf]
    %v661 = vld [vmem:[%s659 + $0x4] sm:$0xf]
    %v662 = vld [vmem:[%s659 + $0x8] sm:$0xf]
    %v663 = vld [vmem:[%s659 + $0xc] sm:$0xf]
    %v664 = vld [vmem:[%s659 + $0x10] sm:$0xf]
    %v665 = vld [vmem:[%s659 + $0x14] sm:$0xf]
    %v666 = vld [vmem:[%s659 + $0x18] sm:$0xf]
    %v667 = vld [vmem:[%s659 + $0x1c] sm:$0xf]
    %v668 = vld [vmem:[%s659 + $0x20] sm:$0xf]
    %v669 = vld [vmem:[%s659 + $0x24] sm:$0xf]
    %v670 = vld [vmem:[%s659 + $0x28] sm:$0xf]
    %v671 = vld [vmem:[%s659 + $0x2c] sm:$0xf]
    %v672 = vld [vmem:[%s659 + $0x30] sm:$0xf]
    %v673 = vld [vmem:[%s659 + $0x34] sm:$0xf]
    %v674 = vld [vmem:[%s659 + $0x38] sm:$0xf]
    %v675 = vld [vmem:[%s659 + $0x3c] sm:$0xf]
    %v676 = vpack.c.bf16 %v557, %v556
    %v677 = vpack.c.bf16 %v618, %v617
    %s678 = scalar_lea.vmem [#allocation5], 256
    %v679 = vld [vmem:[%s678] sm:$0xf]
    %v680 = vld [vmem:[%s678 + $0x4] sm:$0xf]
    %v681 = vld [vmem:[%s678 + $0x8] sm:$0xf]
    %v682 = vld [vmem:[%s678 + $0xc] sm:$0xf]
    %v683 = vld [vmem:[%s678 + $0x10] sm:$0xf]
    %v684 = vld [vmem:[%s678 + $0x14] sm:$0xf]
    %v685 = vld [vmem:[%s678 + $0x18] sm:$0xf]
    %v686 = vld [vmem:[%s678 + $0x1c] sm:$0xf]
    %v687 = vld [vmem:[%s678 + $0x20] sm:$0xf]
    %v688 = vld [vmem:[%s678 + $0x24] sm:$0xf]
    %v689 = vld [vmem:[%s678 + $0x28] sm:$0xf]
    %v690 = vld [vmem:[%s678 + $0x2c] sm:$0xf]
    %v691 = vld [vmem:[%s678 + $0x30] sm:$0xf]
    %v692 = vld [vmem:[%s678 + $0x34] sm:$0xf]
    %v693 = vld [vmem:[%s678 + $0x38] sm:$0xf]
    %v694 = vld [vmem:[%s678 + $0x3c] sm:$0xf]
    %v711 = vunpack.c.l.b16 %v679
    %v712 = vunpack.c.l.b16 %v680
    %v713 = vunpack.c.l.b16 %v681
    %v714 = vunpack.c.l.b16 %v682
    %v715 = vunpack.c.l.b16 %v683
    %v716 = vunpack.c.l.b16 %v684
    %v717 = vunpack.c.l.b16 %v685
    %v718 = vunpack.c.l.b16 %v686
    %v719 = vunpack.c.l.b16 %v687
    %v720 = vunpack.c.l.b16 %v688
    %v721 = vunpack.c.l.b16 %v689
    %v722 = vunpack.c.l.b16 %v690
    %v723 = vunpack.c.l.b16 %v691
    %v724 = vunpack.c.l.b16 %v692
    %v725 = vunpack.c.l.b16 %v693
    %v726 = vunpack.c.l.b16 %v694
    %v727 = vpack.c.b16 %v712, %v711
    %v728 = vpack.c.b16 %v714, %v713
    %v729 = vpack.c.b16 %v716, %v715
    %v730 = vpack.c.b16 %v718, %v717
    %v731 = vpack.c.b16 %v720, %v719
    %v732 = vpack.c.b16 %v722, %v721
    %v733 = vpack.c.b16 %v724, %v723
    %v734 = vpack.c.b16 %v726, %v725
    %743 = vmatprep.subr.bf16.mxu0 0
    %744 = vmatpush1.bf16.msra.mxu0 %v727
    %745 = vmatprep.subr.bf16.mxu0 0
    %746 = vmatpush1.bf16.msra.mxu0 %v728
    %747 = vmatprep.subr.bf16.mxu0 0
    %748 = vmatpush1.bf16.msra.mxu0 %v729
    %749 = vmatprep.subr.bf16.mxu0 0
    %750 = vmatpush1.bf16.msra.mxu0 %v730
    %751 = vmatprep.subr.bf16.mxu0 0
    %752 = vmatpush1.bf16.msra.mxu0 %v731
    %753 = vmatprep.subr.bf16.mxu0 0
    %754 = vmatpush1.bf16.msra.mxu0 %v732
    %755 = vmatprep.subr.bf16.mxu0 0
    %756 = vmatpush1.bf16.msra.mxu0 %v733
    %757 = vmatprep.subr.bf16.mxu0 0
    %758 = vmatpush1.bf16.msra.mxu0 %v734
    %759 = vmatprep.subr.bf16.mxu0 0
    %760 = vmatpush1.bf16.msra.mxu0 0
    %761 = vmatprep.subr.bf16.mxu0 0
    %762 = vmatpush1.bf16.msra.mxu0 0
    %763 = vmatprep.subr.bf16.mxu0 0
    %764 = vmatpush1.bf16.msra.mxu0 0
    %765 = vmatprep.subr.bf16.mxu0 0
    %766 = vmatpush1.bf16.msra.mxu0 0
    %767 = vmatprep.subr.bf16.mxu0 0
    %768 = vmatpush1.bf16.msra.mxu0 0
    %769 = vmatprep.subr.bf16.mxu0 0
    %770 = vmatpush1.bf16.msra.mxu0 0
    %771 = vmatprep.subr.bf16.mxu0 0
    %772 = vmatpush1.bf16.msra.mxu0 0
    %773 = vmatprep.subr.bf16.mxu0 0
    %774 = vmatpush1.bf16.msra.mxu0 0
    %775 = vmatprep.mubr.bf16.mxu0 0
    %776 = vmatmul.mubr.bf16.gmra.mrb[0].mxu0 %v676
    %v777 = vpop.f32.mrb[0].mxu0
    %v778 = vadd.f32 0.0, %v777
    %v779 = vpop.f32.mrb[0].mxu0
    %v780 = vpop.f32.mrb[0].mxu0
    %v781 = vadd.f32 0.0, %v780
    %v782 = vpop.f32.mrb[0].mxu0
    %783 = vmatprep.mubr.bf16.mxu0 0
    %784 = vmatmul.mubr.bf16.gmra.mrb[0].mxu0 %v677
    %v785 = vpop.f32.mrb[0].mxu0
    %v786 = vadd.f32 0.0, %v785
    %v787 = vpop.f32.mrb[0].mxu0
    %v788 = vpop.f32.mrb[0].mxu0
    %v789 = vadd.f32 0.0, %v788
    %v790 = vpop.f32.mrb[0].mxu0
    %791 = vdwg.mxu0
    %v808 = vunpack.c.l.b16 %v660
    %v809 = vunpack.c.l.b16 %v661
    %v810 = vunpack.c.l.b16 %v662
    %v811 = vunpack.c.l.b16 %v663
    %v812 = vunpack.c.l.b16 %v664
    %v813 = vunpack.c.l.b16 %v665
    %v814 = vunpack.c.l.b16 %v666
    %v815 = vunpack.c.l.b16 %v667
    %v816 = vunpack.c.l.b16 %v668
    %v817 = vunpack.c.l.b16 %v669
    %v818 = vunpack.c.l.b16 %v670
    %v819 = vunpack.c.l.b16 %v671
    %v820 = vunpack.c.l.b16 %v672
    %v821 = vunpack.c.l.b16 %v673
    %v822 = vunpack.c.l.b16 %v674
    %v823 = vunpack.c.l.b16 %v675
    %v824 = vpack.c.b16 %v809, %v808
    %v825 = vpack.c.b16 %v811, %v810
    %v826 = vpack.c.b16 %v813, %v812
    %v827 = vpack.c.b16 %v815, %v814
    %v828 = vpack.c.b16 %v817, %v816
    %v829 = vpack.c.b16 %v819, %v818
    %v830 = vpack.c.b16 %v821, %v820
    %v831 = vpack.c.b16 %v823, %v822
    %840 = vmatprep.subr.bf16.mxu0 0
    %841 = vmatpush1.bf16.msra.mxu0 %v824
    %842 = vmatprep.subr.bf16.mxu0 0
    %843 = vmatpush1.bf16.msra.mxu0 %v825
    %844 = vmatprep.subr.bf16.mxu0 0
    %845 = vmatpush1.bf16.msra.mxu0 %v826
    %846 = vmatprep.subr.bf16.mxu0 0
    %847 = vmatpush1.bf16.msra.mxu0 %v827
    %848 = vmatprep.subr.bf16.mxu0 0
    %849 = vmatpush1.bf16.msra.mxu0 %v828
    %850 = vmatprep.subr.bf16.mxu0 0
    %851 = vmatpush1.bf16.msra.mxu0 %v829
    %852 = vmatprep.subr.bf16.mxu0 0
    %853 = vmatpush1.bf16.msra.mxu0 %v830
    %854 = vmatprep.subr.bf16.mxu0 0
    %855 = vmatpush1.bf16.msra.mxu0 %v831
    %856 = vmatprep.subr.bf16.mxu0 0
    %857 = vmatpush1.bf16.msra.mxu0 0
    %858 = vmatprep.subr.bf16.mxu0 0
    %859 = vmatpush1.bf16.msra.mxu0 0
    %860 = vmatprep.subr.bf16.mxu0 0
    %861 = vmatpush1.bf16.msra.mxu0 0
    %862 = vmatprep.subr.bf16.mxu0 0
    %863 = vmatpush1.bf16.msra.mxu0 0
    %864 = vmatprep.subr.bf16.mxu0 0
    %865 = vmatpush1.bf16.msra.mxu0 0
    %866 = vmatprep.subr.bf16.mxu0 0
    %867 = vmatpush1.bf16.msra.mxu0 0
    %868 = vmatprep.subr.bf16.mxu0 0
    %869 = vmatpush1.bf16.msra.mxu0 0
    %870 = vmatprep.subr.bf16.mxu0 0
    %871 = vmatpush1.bf16.msra.mxu0 0
    %872 = vmatprep.mubr.bf16.mxu0 0
    %873 = vmatmul.mubr.bf16.gmra.mrb[0].mxu0 %v657
    %v874 = vpop.f32.mrb[0].mxu0
    %v875 = vadd.f32 %v778, %v874
    %v876 = vpop.f32.mrb[0].mxu0
    %v877 = vpop.f32.mrb[0].mxu0
    %v878 = vadd.f32 %v781, %v877
    %v879 = vpop.f32.mrb[0].mxu0
    %880 = vmatprep.mubr.bf16.mxu0 0
    %881 = vmatmul.mubr.bf16.gmra.mrb[0].mxu0 %v658
    %v882 = vpop.f32.mrb[0].mxu0
    %v883 = vadd.f32 %v786, %v882
    %v884 = vpop.f32.mrb[0].mxu0
    %v885 = vpop.f32.mrb[0].mxu0
    %v886 = vadd.f32 %v789, %v885
    %v887 = vpop.f32.mrb[0].mxu0
    %888 = vdwg.mxu0
    %v889 = vpack.c.bf16 %v654, %v653
    %v890 = vpack.c.bf16 %v656, %v655
    %s891 = scalar_lea.vmem [#allocation5], 320
    %v892 = vld [vmem:[%s891] sm:$0xf]
    %v893 = vld [vmem:[%s891 + $0x4] sm:$0xf]
    %v894 = vld [vmem:[%s891 + $0x8] sm:$0xf]
    %v895 = vld [vmem:[%s891 + $0xc] sm:$0xf]
    %v896 = vld [vmem:[%s891 + $0x10] sm:$0xf]
    %v897 = vld [vmem:[%s891 + $0x14] sm:$0xf]
    %v898 = vld [vmem:[%s891 + $0x18] sm:$0xf]
    %v899 = vld [vmem:[%s891 + $0x1c] sm:$0xf]
    %v900 = vld [vmem:[%s891 + $0x20] sm:$0xf]
    %v901 = vld [vmem:[%s891 + $0x24] sm:$0xf]
    %v902 = vld [vmem:[%s891 + $0x28] sm:$0xf]
    %v903 = vld [vmem:[%s891 + $0x2c] sm:$0xf]
    %v904 = vld [vmem:[%s891 + $0x30] sm:$0xf]
    %v905 = vld [vmem:[%s891 + $0x34] sm:$0xf]
    %v906 = vld [vmem:[%s891 + $0x38] sm:$0xf]
    %v907 = vld [vmem:[%s891 + $0x3c] sm:$0xf]
    %v924 = vunpack.c.l.b16 %v892
    %v925 = vunpack.c.l.b16 %v893
    %v926 = vunpack.c.l.b16 %v894
    %v927 = vunpack.c.l.b16 %v895
    %v928 = vunpack.c.l.b16 %v896
    %v929 = vunpack.c.l.b16 %v897
    %v930 = vunpack.c.l.b16 %v898
    %v931 = vunpack.c.l.b16 %v899
    %v932 = vunpack.c.l.b16 %v900
    %v933 = vunpack.c.l.b16 %v901
    %v934 = vunpack.c.l.b16 %v902
    %v935 = vunpack.c.l.b16 %v903
    %v936 = vunpack.c.l.b16 %v904
    %v937 = vunpack.c.l.b16 %v905
    %v938 = vunpack.c.l.b16 %v906
    %v939 = vunpack.c.l.b16 %v907
    %v940 = vpack.c.b16 %v925, %v924
    %v941 = vpack.c.b16 %v927, %v926
    %v942 = vpack.c.b16 %v929, %v928
    %v943 = vpack.c.b16 %v931, %v930
    %v944 = vpack.c.b16 %v933, %v932
    %v945 = vpack.c.b16 %v935, %v934
    %v946 = vpack.c.b16 %v937, %v936
    %v947 = vpack.c.b16 %v939, %v938
    %956 = vmatprep.subr.bf16.mxu0 0
    %957 = vmatpush1.bf16.msra.mxu0 %v940
    %958 = vmatprep.subr.bf16.mxu0 0
    %959 = vmatpush1.bf16.msra.mxu0 %v941
    %960 = vmatprep.subr.bf16.mxu0 0
    %961 = vmatpush1.bf16.msra.mxu0 %v942
    %962 = vmatprep.subr.bf16.mxu0 0
    %963 = vmatpush1.bf16.msra.mxu0 %v943
    %964 = vmatprep.subr.bf16.mxu0 0
    %965 = vmatpush1.bf16.msra.mxu0 %v944
    %966 = vmatprep.subr.bf16.mxu0 0
    %967 = vmatpush1.bf16.msra.mxu0 %v945
    %968 = vmatprep.subr.bf16.mxu0 0
    %969 = vmatpush1.bf16.msra.mxu0 %v946
    %970 = vmatprep.subr.bf16.mxu0 0
    %971 = vmatpush1.bf16.msra.mxu0 %v947
    %972 = vmatprep.subr.bf16.mxu0 0
    %973 = vmatpush1.bf16.msra.mxu0 0
    %974 = vmatprep.subr.bf16.mxu0 0
    %975 = vmatpush1.bf16.msra.mxu0 0
    %976 = vmatprep.subr.bf16.mxu0 0
    %977 = vmatpush1.bf16.msra.mxu0 0
    %978 = vmatprep.subr.bf16.mxu0 0
    %979 = vmatpush1.bf16.msra.mxu0 0
    %980 = vmatprep.subr.bf16.mxu0 0
    %981 = vmatpush1.bf16.msra.mxu0 0
    %982 = vmatprep.subr.bf16.mxu0 0
    %983 = vmatpush1.bf16.msra.mxu0 0
    %984 = vmatprep.subr.bf16.mxu0 0
    %985 = vmatpush1.bf16.msra.mxu0 0
    %986 = vmatprep.subr.bf16.mxu0 0
    %987 = vmatpush1.bf16.msra.mxu0 0
    %988 = vmatprep.mubr.bf16.mxu0 0
    %989 = vmatmul.mubr.bf16.gmra.mrb[0].mxu0 %v889
    %v990 = vpop.f32.mrb[0].mxu0
    %v991 = vadd.f32 0.0, %v990
    %v992 = vpop.f32.mrb[0].mxu0
    %v993 = vpop.f32.mrb[0].mxu0
    %v994 = vadd.f32 0.0, %v993
    %v995 = vpop.f32.mrb[0].mxu0
    %996 = vmatprep.mubr.bf16.mxu0 0
    %997 = vmatmul.mubr.bf16.gmra.mrb[0].mxu0 %v890
    %v998 = vpop.f32.mrb[0].mxu0
    %v999 = vadd.f32 0.0, %v998
    %v1000 = vpop.f32.mrb[0].mxu0
    %v1001 = vpop.f32.mrb[0].mxu0
    %v1002 = vadd.f32 0.0, %v1001
    %v1003 = vpop.f32.mrb[0].mxu0
    %1004 = vdwg.mxu0
    %v1005 = vadd.f32 %v875, %v991
    %v1006 = vadd.f32 %v878, %v994
    %v1007 = vadd.f32 %v883, %v999
    %v1008 = vadd.f32 %v886, %v1002
    %v1009 = vadd.f32 %v1005, %v1006
    %v1010 = vrot.slane %v1009, 4
    %v1011 = vadd.f32 %v1009, %v1010
    %v1012 = vrot.slane %v1011, 2
    %v1013 = vadd.f32 %v1011, %v1012
    %v1014 = vrot.slane %v1013, 1
    %v1015 = vadd.f32 %v1013, %v1014
    %v1016 = vmul.f32 %v1005, %v1005
    %v1017 = vmul.f32 %v1006, %v1006
    %v1018 = vadd.f32 %v1016, %v1017
    %v1019 = vrot.slane %v1018, 4
    %v1020 = vadd.f32 %v1018, %v1019
    %v1021 = vrot.slane %v1020, 2
    %v1022 = vadd.f32 %v1020, %v1021
    %v1023 = vrot.slane %v1022, 1
    %v1024 = vadd.f32 %v1022, %v1023
    %1025 = vrot.lane.b32.xlu0 %v1015, 8
    %v1026 = vpop.permute.xlu0 %1025
    %v1027 = vadd.f32 %v1015, %v1026
    %1028 = vrot.lane.b32.xlu0 %v1024, 8
    %v1029 = vpop.permute.xlu0 %1028
    %v1030 = vadd.f32 %v1024, %v1029
    %1031 = vrot.lane.b32.xlu0 %v1027, 16
    %v1032 = vpop.permute.xlu0 %1031
    %v1033 = vadd.f32 %v1027, %v1032
    %1034 = vrot.lane.b32.xlu0 %v1030, 16
    %v1035 = vpop.permute.xlu0 %1034
    %v1036 = vadd.f32 %v1030, %v1035
    %1037 = vrot.lane.b32.xlu0 %v1033, 32
    %v1038 = vpop.permute.xlu0 %1037
    %v1039 = vadd.f32 %v1033, %v1038
    %1040 = vrot.lane.b32.xlu0 %v1036, 32
    %v1041 = vpop.permute.xlu0 %1040
    %v1042 = vadd.f32 %v1036, %v1041
    %1043 = vrot.lane.b32.xlu0 %v1039, 64
    %v1044 = vpop.permute.xlu0 %1043
    %v1045 = vadd.f32 %v1039, %v1044
    %1046 = vrot.lane.b32.xlu0 %v1042, 64
    %v1047 = vpop.permute.xlu0 %1046
    %v1048 = vadd.f32 %v1042, %v1047
    %v1049 = vmul.f32 %v1045, 0.00390625
    %v1050 = vmul.f32 %v1048, 0.00390625
    %v1051 = vmul.f32 %v1049, %v1049
    %v1052 = vsub.f32 %v1050, %v1051
    %v1053 = vmax.f32 %v1052, 0.0
    %v1054 = vlaneseq
    %v1055 = vshrl.u32 %v1054, 7
    %v1056 = vsub.s32 0, %v1055
    %v1057 = vrot.slane %v1049, %v1056
    %v1058 = vsub.f32 %v1005, %v1057
    %v1059 = vsub.f32 %v1006, %v1057
    %v1060 = vadd.f32 %v1053, 1e-05
    %v1061 = vrsqrt.pop %v1060
    %v1062 = vlaneseq
    %v1063 = vshrl.u32 %v1062, 7
    %v1064 = vsub.s32 0, %v1063
    %v1065 = vrot.slane %v1061, %v1064
    %v1066 = vmul.f32 %v1058, %v1065
    %v1067 = vmul.f32 %v1059, %v1065
    %v1068 = vmax.f32 %v1066, 0.0
    %v1069 = vmax.f32 %v1067, 0.0
    %v1070 = vadd.f32 %v1007, %v1008
    %v1071 = vrot.slane %v1070, 4
    %v1072 = vadd.f32 %v1070, %v1071
    %v1073 = vrot.slane %v1072, 2
    %v1074 = vadd.f32 %v1072, %v1073
    %v1075 = vrot.slane %v1074, 1
    %v1076 = vadd.f32 %v1074, %v1075
    %v1077 = vmul.f32 %v1007, %v1007
    %v1078 = vmul.f32 %v1008, %v1008
    %v1079 = vadd.f32 %v1077, %v1078
    %v1080 = vrot.slane %v1079, 4
    %v1081 = vadd.f32 %v1079, %v1080
    %v1082 = vrot.slane %v1081, 2
    %v1083 = vadd.f32 %v1081, %v1082
    %v1084 = vrot.slane %v1083, 1
    %v1085 = vadd.f32 %v1083, %v1084
    %1086 = vrot.lane.b32.xlu0 %v1076, 8
    %v1087 = vpop.permute.xlu0 %1086
    %v1088 = vadd.f32 %v1076, %v1087
    %1089 = vrot.lane.b32.xlu0 %v1085, 8
    %v1090 = vpop.permute.xlu0 %1089
    %v1091 = vadd.f32 %v1085, %v1090
    %1092 = vrot.lane.b32.xlu0 %v1088, 16
    %v1093 = vpop.permute.xlu0 %1092
    %v1094 = vadd.f32 %v1088, %v1093
    %1095 = vrot.lane.b32.xlu0 %v1091, 16
    %v1096 = vpop.permute.xlu0 %1095
    %v1097 = vadd.f32 %v1091, %v1096
    %1098 = vrot.lane.b32.xlu0 %v1094, 32
    %v1099 = vpop.permute.xlu0 %1098
    %v1100 = vadd.f32 %v1094, %v1099
    %1101 = vrot.lane.b32.xlu0 %v1097, 32
    %v1102 = vpop.permute.xlu0 %1101
    %v1103 = vadd.f32 %v1097, %v1102
    %1104 = vrot.lane.b32.xlu0 %v1100, 64
    %v1105 = vpop.permute.xlu0 %1104
    %v1106 = vadd.f32 %v1100, %v1105
    %1107 = vrot.lane.b32.xlu0 %v1103, 64
    %v1108 = vpop.permute.xlu0 %1107
    %v1109 = vadd.f32 %v1103, %v1108
    %v1110 = vmul.f32 %v1106, 0.00390625
    %v1111 = vmul.f32 %v1109, 0.00390625
    %v1112 = vmul.f32 %v1110, %v1110
    %v1113 = vsub.f32 %v1111, %v1112
    %v1114 = vmax.f32 %v1113, 0.0
    %v1115 = vlaneseq
    %v1116 = vshrl.u32 %v1115, 7
    %v1117 = vsub.s32 0, %v1116
    %v1118 = vrot.slane %v1110, %v1117
    %v1119 = vsub.f32 %v1007, %v1118
    %v1120 = vsub.f32 %v1008, %v1118
    %v1121 = vadd.f32 %v1114, 1e-05
    %v1122 = vrsqrt.pop %v1121
    %v1123 = vlaneseq
    %v1124 = vshrl.u32 %v1123, 7
    %v1125 = vsub.s32 0, %v1124
    %v1126 = vrot.slane %v1122, %v1125
    %v1127 = vmul.f32 %v1119, %v1126
    %v1128 = vmul.f32 %v1120, %v1126
    %v1129 = vmax.f32 %v1127, 0.0
    %v1130 = vmax.f32 %v1128, 0.0
    %v1131 = vadd.f32 %v1068, %v41
    %v1132 = vadd.f32 %v1069, %v42
    %v1133 = vadd.f32 %v1129, %v43
    %v1134 = vadd.f32 %v1130, %v44
    %1135 = vst [vmem:[#allocation7] sm:$0xff] %v1131
    %1136 = vst [vmem:[#allocation7 + $0x8] sm:$0xff] %v1132
    %1137 = vst [vmem:[#allocation7 + $0x10] sm:$0xff] %v1133
    %1138 = vst [vmem:[#allocation7 + $0x18] sm:$0xff] %v1134
    // Predicated region
    $region18: #{tpu_custom_call.1} parent=1 // pred_check
      _
    $region19: #{tpu_custom_call.1} parent=1 // pred_check_branch
      %1140 = sbr.rel (0) target = $region21
    $region20: #{tpu_custom_call.1} parent=1 // pred_region
      %s1142 = ssub.s32 512, 512
      %1143 = vsyncadd [#allocation4], %s1142
      %s1144 = sshll.u32 [#allocation7], 4
      %s1145 = int_to_ptr.vmem [resolvable:$true] %s1144
      %1150 = dma.vmem_to_hbm [thread:$0]  %s1145, 512, %s2, [#allocation4], 128, 128, 8
    $region21: #{tpu_custom_call.1} parent=1 // pred_fallthru
      _
    // Predicated region
    $region22: #{tpu_custom_call.1} parent=1 // pred_check
      _
    $region23: #{tpu_custom_call.1} parent=1 // pred_check_branch
      %1152 = sbr.rel (0) target = $region25
    $region24: #{tpu_custom_call.1} parent=1 // pred_region
      %1153 = dma.done [#allocation4], 512
    $region25: #{tpu_custom_call.1} parent=1 // pred_fallthru
      _
    %1154 = vsyncpa [#allocation3], 1
    %1155 = vsyncpa [#allocation6], 1
    %1156 = vsyncpa [#allocation4], 1

</llo_original>
